<compile_context>
chip_gen: v7x
topology: tpu7x:2x2x1
jax: 0.10.0
libtpu: 0.0.40
codegen_flags: <defaults>
</compile_context>

<pallas_src>
import jax
import jax.numpy as jnp
from jax.experimental import pallas as pl
from jax.experimental.pallas import tpu as pltpu


def attention_kernel(z_ref, t_ref,
                     wq_ref, bq_ref,
                     wk_ref, bk_ref,
                     wv_ref, bv_ref,
                     out_ref, attn_ref,
                     k_scratch, v_scratch):
    qi = pl.program_id(1)

    # K/V projections only on the first q tile of each batch block; the
    # results stay resident in VMEM scratch for all remaining q tiles.
    @pl.when(qi == 0)
    def _compute_kv():
        tb = t_ref[...]                                  # (bt, Lk, d_treatment)
        bt_, lk_, dt_ = tb.shape
        tf = tb.reshape(bt_ * lk_, dt_)
        k = jnp.dot(tf, wk_ref[...], preferred_element_type=jnp.float32) + bk_ref[...]
        v = jnp.dot(tf, wv_ref[...], preferred_element_type=jnp.float32) + bv_ref[...]
        dm_ = k.shape[-1]
        k_scratch[...] = k.reshape(bt_, lk_, dm_)
        v_scratch[...] = v.reshape(bt_, lk_, dm_)

    zb = z_ref[...]                                      # (bt, tq, d_model)
    bt, tq, d_model = zb.shape

    # Q projection: one (bt*tq, d_model) MXU matmul.  The 1/sqrt(d_model)
    # softmax scale is already folded into Wq/bq (see prepare_params).
    zf = zb.reshape(bt * tq, d_model)
    q = jnp.dot(zf, wq_ref[...], preferred_element_type=jnp.float32) + bq_ref[...]
    q = q.reshape(bt, tq, d_model)

    k = k_scratch[...]                                   # (bt, Lk, d_model) f32
    v = v_scratch[...]

    # Batched Q @ K^T contracting the last dims directly (no K^T copy).
    scores = jnp.einsum("bqd,bkd->bqk", q, k,
                        preferred_element_type=jnp.float32)      # (bt, tq, Lk)

    # Numerically stable softmax; reciprocal runs on the EUP slot.
    m = jnp.max(scores, axis=-1, keepdims=True)
    e = jnp.exp(scores - m)
    s = jnp.sum(e, axis=-1, keepdims=True)
    attn = e * pl.reciprocal(s, approx=True)                     # (bt, tq, Lk)

    attn_out = jnp.einsum("bqk,bkd->bqd", attn, v,
                          preferred_element_type=jnp.float32)    # (bt, tq, d_model)

    out_ref[...] = (zb.astype(jnp.float32) + attn_out).astype(out_ref.dtype)
    attn_ref[...] = attn.astype(attn_ref.dtype)


def _largest_divisor(n, cap):
    cap = max(1, min(n, cap))
    for d in range(cap, 0, -1):
        if n % d == 0:
            return d
    return 1


def _vmem_limit_bytes():
    """Per-generation scoped VMEM limit: ~3/4 of physical, capped at 100 MiB.
    (v5e/v6e: 96 MiB of 128; v7x: 48 MiB of 64 -- leaves compiler headroom.)"""
    default = 64 * 1024 * 1024
    try:
        info = pltpu.get_tpu_info()
        cap = getattr(info, "vmem_capacity_bytes", None)
        if not cap:
            return default
        return min(int(cap) * 3 // 4, 100 * 1024 * 1024)
    except Exception:
        return default


def _select_tiles(B, Lq, Lk, d_model, d_treatment, vmem_limit):
    """Pick (bt, tq) so live f32 intermediates + double-buffered blocks +
    K/V scratch fit in roughly half the scoped VMEM limit."""
    f32 = 4
    budget = vmem_limit // 2

    def fits(bt, tq):
        live_scores = 3 * bt * tq * Lk * f32                       # scores / exp / attn
        out_blocks = 2 * bt * tq * (Lk + d_model) * f32            # double-buffered outputs
        in_blocks = 2 * bt * (tq * d_model + Lk * d_treatment) * f32
        kv_scratch = 2 * bt * Lk * d_model * f32
        return live_scores + out_blocks + in_blocks + kv_scratch <= budget

    # Target >= 256 rows per projection matmul (fills the v6e/v7x MXU), but
    # bound tq (it multiplies the (tq, Lk) score tile) and shrink bt first
    # when the footprint does not fit (Lk-heavy cases).
    tq = _largest_divisor(Lq, 256)
    bt = _largest_divisor(B, max(1, 256 // tq))
    while not fits(bt, tq) and bt > 1:
        bt = _largest_divisor(B, bt // 2)
    while not fits(bt, tq) and tq > 8:
        tq = _largest_divisor(Lq, tq // 2)

    # Guarantee >= 2 steps on the "parallel" batch axis so both v7x
    # TensorCores get work (and the pipeline has something to overlap).
    if B // bt < 2 and bt > 1:
        bt = _largest_divisor(B, bt // 2)
    return bt, tq


def attention_mechanism(z, t, params, *, batch_block=None, q_block=None,
                        attn_dtype=None):
    """z: (B, Lq, d_model), t: (B, Lk, d_treatment).
    params must come from prepare_params (scale folded into Wq/bq).
    Returns (z_with_attention, attention_weights)."""
    B, Lq, d_model = z.shape
    _, Lk, d_treatment = t.shape

    wq, bq, wk, bk, wv, bv = params
    bq2 = bq.reshape(1, d_model)
    bk2 = bk.reshape(1, d_model)
    bv2 = bv.reshape(1, d_model)

    vmem_limit = _vmem_limit_bytes()
    bt, tq = _select_tiles(B, Lq, Lk, d_model, d_treatment, vmem_limit)
    if batch_block is not None:
        bt = batch_block
    if q_block is not None:
        tq = q_block
    assert B % bt == 0 and Lq % tq == 0

    if attn_dtype is None:
        # bf16 inputs -> bf16 attention writeback (halves the dominant HBM
        # store + largest double-buffered VMEM block); f32 inputs stay f32.
        attn_dtype = z.dtype

    out_shape = (
        jax.ShapeDtypeStruct((B, Lq, d_model), z.dtype),
        jax.ShapeDtypeStruct((B, Lq, Lk), attn_dtype),
    )

    def build(weight_pipeline_mode):
        def weight_spec(shape):
            if weight_pipeline_mode is None:
                return pl.BlockSpec(shape, lambda b, q: (0, 0))
            return pl.BlockSpec(shape, lambda b, q: (0, 0),
                                pipeline_mode=weight_pipeline_mode)

        grid_spec = pltpu.PrefetchScalarGridSpec(
            num_scalar_prefetch=0,
            grid=(B // bt, Lq // tq),
            in_specs=[
                pl.BlockSpec((bt, tq, d_model), lambda b, q: (b, q, 0)),      # z
                pl.BlockSpec((bt, Lk, d_treatment), lambda b, q: (b, 0, 0)),  # t
                weight_spec((d_model, d_model)),      # Wq (scale pre-folded)
                weight_spec((1, d_model)),            # bq (scale pre-folded)
                weight_spec((d_treatment, d_model)),  # Wk
                weight_spec((1, d_model)),            # bk
                weight_spec((d_treatment, d_model)),  # Wv
                weight_spec((1, d_model)),            # bv
            ],
            out_specs=[
                pl.BlockSpec((bt, tq, d_model), lambda b, q: (b, q, 0)),
                pl.BlockSpec((bt, tq, Lk), lambda b, q: (b, q, 0)),
            ],
            scratch_shapes=[
                pltpu.VMEM((bt, Lk, d_model), jnp.float32),   # cached K
                pltpu.VMEM((bt, Lk, d_model), jnp.float32),   # cached V
            ],
        )
        return pl.pallas_call(
            attention_kernel,
            out_shape=out_shape,
            grid_spec=grid_spec,
            compiler_params=pltpu.CompilerParams(
                dimension_semantics=("parallel", "arbitrary"),
                vmem_limit_bytes=vmem_limit,
            ),
        )

    args = (z, t, wq, bq2, wk, bk2, wv, bv2)
    try:
        # Single-buffer the resident weights (constant index maps -> the
        # second pipeline buffer is pure VMEM waste).
        res = build(pl.Buffered(1))(*args)
        jax.block_until_ready(res)
        return res
    except Exception:
        # Fallback: default double-buffered weights (identical results).
        return build(None)(*args)


def prepare_params(params, d_model):
    """One-time transform: fold 1/sqrt(d_model) into Wq and bq so the kernel
    never multiplies the Q tile by the softmax scale (amortized across calls)."""
    wq, bq, wk, bk, wv, bv = params
    inv_scale = 1.0 / (float(d_model) ** 0.5)
    return (wq * inv_scale, bq * inv_scale, wk, bk, wv, bv)


def init_params(key, d_model, d_treatment):
    """Deterministic param init. Weights stored as (in_features, out_features)."""
    ks = jax.random.split(key, 6)

    def linear_init(kw, kb, fan_in, fan_out):
        bound = 1.0 / jnp.sqrt(jnp.float32(fan_in))
        w = jax.random.uniform(kw, (fan_in, fan_out), jnp.float32, -bound, bound)
        b = jax.random.uniform(kb, (fan_out,), jnp.float32, -bound, bound)
        return w, b

    wq, bq = linear_init(ks[0], ks[1], d_model, d_model)
    wk, bk = linear_init(ks[2], ks[3], d_treatment, d_model)
    wv, bv = linear_init(ks[4], ks[5], d_treatment, d_model)
    return (wq, bq, wk, bk, wv, bv)


def reference(z, t, params):
    wq, bq, wk, bk, wv, bv = params
    q = z @ wq + bq
    k = t @ wk + bk
    v = t @ wv + bv
    scores = jnp.einsum("bqd,bkd->bqk", q, k) / jnp.sqrt(jnp.float32(z.shape[-1]))
    attn = jax.nn.softmax(scores, axis=-1)
    out = z + jnp.einsum("bqk,bkd->bqd", attn, v)
    return out, attn


if __name__ == "__main__":
    B, Lq, Lk = 2, 8, 8
    d_model, d_treatment = 32, 16

    key = jax.random.PRNGKey(0)
    kz, kt, kp = jax.random.split(key, 3)
    z = jax.random.normal(kz, (B, Lq, d_model), jnp.float32)
    t = jax.random.normal(kt, (B, Lk, d_treatment), jnp.float32)
    params = init_params(kp, d_model, d_treatment)
    kernel_params = prepare_params(params, d_model)

    out, attn = attention_mechanism(z, t, kernel_params)
    out = jax.block_until_ready(out)
    attn = jax.block_until_ready(attn)

    ref_out, ref_attn = reference(z, t, params)
    # Tolerance accounts for the EUP approximate reciprocal in the softmax
    # (relative error ~1e-4); with approx=False the kernel matches to ~1e-6.
    assert jnp.allclose(out, ref_out, atol=2e-3, rtol=2e-3), "output mismatch"
    assert jnp.allclose(attn, ref_attn, atol=2e-3, rtol=2e-3), "attention mismatch"

    print("KERNEL_OK")
</pallas_src>

<mosaic_0001>
module attributes {stable_mosaic.version = 11 : i64} {
  func.func @attention_kernel(%arg0: i32, %arg1: i32, %arg2: memref<1x8x32xf32, #tpu.memory_space<vmem>>, %arg3: memref<1x8x16xf32, #tpu.memory_space<vmem>>, %arg4: memref<32x32xf32, #tpu.memory_space<vmem>>, %arg5: memref<1x32xf32, #tpu.memory_space<vmem>>, %arg6: memref<16x32xf32, #tpu.memory_space<vmem>>, %arg7: memref<1x32xf32, #tpu.memory_space<vmem>>, %arg8: memref<16x32xf32, #tpu.memory_space<vmem>>, %arg9: memref<1x32xf32, #tpu.memory_space<vmem>>, %arg10: memref<1x8x32xf32, #tpu.memory_space<vmem>>, %arg11: memref<1x8x8xf32, #tpu.memory_space<vmem>>, %arg12: memref<1x8x32xf32, #tpu.memory_space<vmem>>, %arg13: memref<1x8x32xf32, #tpu.memory_space<vmem>>) attributes {dimension_semantics = [#tpu.dimension_semantics<parallel>, #tpu.dimension_semantics<arbitrary>], iteration_bounds = array<i64: 2, 1>, scalar_prefetch = 0 : i64, scratch_operands = 2 : i64, tpu.core_type = #tpu.core_type<tc>, window_params = [{transform_indices = @transform_0, window_bounds = array<i64: 1, 8, 32>}, {transform_indices = @transform_1, window_bounds = array<i64: 1, 8, 16>}, {pipeline_mode = #tpu.pipeline_mode<synchronous>, transform_indices = @transform_2, window_bounds = array<i64: 32, 32>}, {pipeline_mode = #tpu.pipeline_mode<synchronous>, transform_indices = @transform_3, window_bounds = array<i64: 1, 32>}, {pipeline_mode = #tpu.pipeline_mode<synchronous>, transform_indices = @transform_4, window_bounds = array<i64: 16, 32>}, {pipeline_mode = #tpu.pipeline_mode<synchronous>, transform_indices = @transform_5, window_bounds = array<i64: 1, 32>}, {pipeline_mode = #tpu.pipeline_mode<synchronous>, transform_indices = @transform_6, window_bounds = array<i64: 16, 32>}, {pipeline_mode = #tpu.pipeline_mode<synchronous>, transform_indices = @transform_7, window_bounds = array<i64: 1, 32>}, {transform_indices = @transform_8, window_bounds = array<i64: 1, 8, 32>}, {transform_indices = @transform_9, window_bounds = array<i64: 1, 8, 8>}]} {
    %c0_i32 = arith.constant 0 : i32
    %0 = arith.cmpi eq, %arg1, %c0_i32 : i32
    %1 = arith.extui %0 : i1 to i32
    %c0_i32_0 = arith.constant 0 : i32
    %2 = arith.cmpi ne, %1, %c0_i32_0 : i32
    scf.if %2 {
      %c0_23 = arith.constant 0 : index
      %c0_24 = arith.constant 0 : index
      %c0_25 = arith.constant 0 : index
      %28 = vector.load %arg3[%c0_23, %c0_24, %c0_25] : memref<1x8x16xf32, #tpu.memory_space<vmem>>, vector<1x8x16xf32>
      %29 = vector.shape_cast %28 : vector<1x8x16xf32> to vector<8x16xf32>
      %c0_26 = arith.constant 0 : index
      %c0_27 = arith.constant 0 : index
      %30 = vector.load %arg6[%c0_26, %c0_27] : memref<16x32xf32, #tpu.memory_space<vmem>>, vector<16x32xf32>
      %cst_28 = arith.constant dense<0.000000e+00> : vector<8x32xf32>
      %31 = tpu.matmul %29, %30, %cst_28 {dimension_numbers = #tpu.dot_dimension_numbers<[1], [0], [0], [1], [0, 0, 1, 1], [], []>} : vector<8x16xf32>, vector<16x32xf32>, vector<8x32xf32> -> vector<8x32xf32>
      %c0_29 = arith.constant 0 : index
      %c0_30 = arith.constant 0 : index
      %32 = vector.load %arg7[%c0_29, %c0_30] : memref<1x32xf32, #tpu.memory_space<vmem>>, vector<1x32xf32>
      %33 = vector.broadcast %32 : vector<1x32xf32> to vector<8x32xf32>
      %34 = arith.addf %31, %33 : vector<8x32xf32>
      %c0_31 = arith.constant 0 : index
      %c0_32 = arith.constant 0 : index
      %35 = vector.load %arg8[%c0_31, %c0_32] : memref<16x32xf32, #tpu.memory_space<vmem>>, vector<16x32xf32>
      %cst_33 = arith.constant dense<0.000000e+00> : vector<8x32xf32>
      %36 = tpu.matmul %29, %35, %cst_33 {dimension_numbers = #tpu.dot_dimension_numbers<[1], [0], [0], [1], [0, 0, 1, 1], [], []>} : vector<8x16xf32>, vector<16x32xf32>, vector<8x32xf32> -> vector<8x32xf32>
      %c0_34 = arith.constant 0 : index
      %c0_35 = arith.constant 0 : index
      %37 = vector.load %arg9[%c0_34, %c0_35] : memref<1x32xf32, #tpu.memory_space<vmem>>, vector<1x32xf32>
      %38 = vector.broadcast %37 : vector<1x32xf32> to vector<8x32xf32>
      %39 = arith.addf %36, %38 : vector<8x32xf32>
      %40 = vector.shape_cast %34 : vector<8x32xf32> to vector<1x8x32xf32>
      %c0_36 = arith.constant 0 : index
      %c0_37 = arith.constant 0 : index
      %c0_38 = arith.constant 0 : index
      %41 = vector.load %arg12[%c0_36, %c0_37, %c0_38] : memref<1x8x32xf32, #tpu.memory_space<vmem>>, vector<1x8x32xf32>
      tpu.vector_store %arg12[%c0_36, %c0_37, %c0_38], %40 {strides = array<i32>} : memref<1x8x32xf32, #tpu.memory_space<vmem>>, vector<1x8x32xf32>,
      %42 = vector.shape_cast %39 : vector<8x32xf32> to vector<1x8x32xf32>
      %c0_39 = arith.constant 0 : index
      %c0_40 = arith.constant 0 : index
      %c0_41 = arith.constant 0 : index
      %43 = vector.load %arg13[%c0_39, %c0_40, %c0_41] : memref<1x8x32xf32, #tpu.memory_space<vmem>>, vector<1x8x32xf32>
      tpu.vector_store %arg13[%c0_39, %c0_40, %c0_41], %42 {strides = array<i32>} : memref<1x8x32xf32, #tpu.memory_space<vmem>>, vector<1x8x32xf32>,
    } else {
    }
    %c0 = arith.constant 0 : index
    %c0_1 = arith.constant 0 : index
    %c0_2 = arith.constant 0 : index
    %3 = vector.load %arg2[%c0, %c0_1, %c0_2] : memref<1x8x32xf32, #tpu.memory_space<vmem>>, vector<1x8x32xf32>
    %4 = vector.shape_cast %3 : vector<1x8x32xf32> to vector<8x32xf32>
    %c0_3 = arith.constant 0 : index
    %c0_4 = arith.constant 0 : index
    %5 = vector.load %arg4[%c0_3, %c0_4] : memref<32x32xf32, #tpu.memory_space<vmem>>, vector<32x32xf32>
    %cst = arith.constant dense<0.000000e+00> : vector<8x32xf32>
    %6 = tpu.matmul %4, %5, %cst {dimension_numbers = #tpu.dot_dimension_numbers<[1], [0], [0], [1], [0, 0, 1, 1], [], []>} : vector<8x32xf32>, vector<32x32xf32>, vector<8x32xf32> -> vector<8x32xf32>
    %c0_5 = arith.constant 0 : index
    %c0_6 = arith.constant 0 : index
    %7 = vector.load %arg5[%c0_5, %c0_6] : memref<1x32xf32, #tpu.memory_space<vmem>>, vector<1x32xf32>
    %8 = vector.broadcast %7 : vector<1x32xf32> to vector<8x32xf32>
    %9 = arith.addf %6, %8 : vector<8x32xf32>
    %10 = vector.shape_cast %9 : vector<8x32xf32> to vector<1x8x32xf32>
    %c0_7 = arith.constant 0 : index
    %c0_8 = arith.constant 0 : index
    %c0_9 = arith.constant 0 : index
    %11 = vector.load %arg12[%c0_7, %c0_8, %c0_9] : memref<1x8x32xf32, #tpu.memory_space<vmem>>, vector<1x8x32xf32>
    %c0_10 = arith.constant 0 : index
    %c0_11 = arith.constant 0 : index
    %c0_12 = arith.constant 0 : index
    %12 = vector.load %arg13[%c0_10, %c0_11, %c0_12] : memref<1x8x32xf32, #tpu.memory_space<vmem>>, vector<1x8x32xf32>
    "tpu.trace_start"() <{level = 10 : i32, message = "bqd,bkd->bqk"}> : () -> ()
    %cst_13 = arith.constant dense<0.000000e+00> : vector<1x8x8xf32>
    %13 = tpu.matmul %10, %11, %cst_13 {dimension_numbers = #tpu.dot_dimension_numbers<[2], [2], [1], [1], [0, 0, 0, 1, 1, 1], [0], [0]>} : vector<1x8x32xf32>, vector<1x8x32xf32>, vector<1x8x8xf32> -> vector<1x8x8xf32>
    "tpu.trace_stop"() : () -> ()
    %cst_14 = arith.constant dense<0xFF800000> : vector<1x8xf32>
    %14 = vector.multi_reduction <maximumf>, %13, %cst_14 [2] : vector<1x8x8xf32> to vector<1x8xf32>
    %15 = vector.shape_cast %14 : vector<1x8xf32> to vector<1x8x1xf32>
    %16 = vector.broadcast %15 : vector<1x8x1xf32> to vector<1x8x8xf32>
    %17 = arith.subf %13, %16 : vector<1x8x8xf32>
    %18 = math.exp %17 : vector<1x8x8xf32>
    %cst_15 = arith.constant dense<0.000000e+00> : vector<1x8xf32>
    %19 = vector.multi_reduction <add>, %18, %cst_15 [2] : vector<1x8x8xf32> to vector<1x8xf32>
    %20 = vector.shape_cast %19 : vector<1x8xf32> to vector<1x8x1xf32>
    %21 = tpu.reciprocal %20 {approx = true} : vector<1x8x1xf32> -> vector<1x8x1xf32>
    %22 = vector.broadcast %21 : vector<1x8x1xf32> to vector<1x8x8xf32>
    %23 = arith.mulf %18, %22 : vector<1x8x8xf32>
    "tpu.trace_start"() <{level = 10 : i32, message = "bqk,bkd->bqd"}> : () -> ()
    %cst_16 = arith.constant dense<0.000000e+00> : vector<1x8x32xf32>
    %24 = tpu.matmul %23, %12, %cst_16 {dimension_numbers = #tpu.dot_dimension_numbers<[2], [1], [1], [2], [0, 0, 0, 1, 1, 2], [0], [0]>} : vector<1x8x8xf32>, vector<1x8x32xf32>, vector<1x8x32xf32> -> vector<1x8x32xf32>
    "tpu.trace_stop"() : () -> ()
    %25 = arith.addf %3, %24 : vector<1x8x32xf32>
    %c0_17 = arith.constant 0 : index
    %c0_18 = arith.constant 0 : index
    %c0_19 = arith.constant 0 : index
    %26 = vector.load %arg10[%c0_17, %c0_18, %c0_19] : memref<1x8x32xf32, #tpu.memory_space<vmem>>, vector<1x8x32xf32>
    tpu.vector_store %arg10[%c0_17, %c0_18, %c0_19], %25 {strides = array<i32>} : memref<1x8x32xf32, #tpu.memory_space<vmem>>, vector<1x8x32xf32>,
    %c0_20 = arith.constant 0 : index
    %c0_21 = arith.constant 0 : index
    %c0_22 = arith.constant 0 : index
    %27 = vector.load %arg11[%c0_20, %c0_21, %c0_22] : memref<1x8x8xf32, #tpu.memory_space<vmem>>, vector<1x8x8xf32>
    tpu.vector_store %arg11[%c0_20, %c0_21, %c0_22], %23 {strides = array<i32>} : memref<1x8x8xf32, #tpu.memory_space<vmem>>, vector<1x8x8xf32>,
    return
  }
  func.func @transform_0(%arg0: i32, %arg1: i32) -> (i32, i32, i32) {
    %c0_i32 = arith.constant 0 : i32
    %c0_i32_0 = arith.constant 0 : i32
    return %arg0, %arg1, %c0_i32 : i32, i32, i32
  }
  func.func @transform_1(%arg0: i32, %arg1: i32) -> (i32, i32, i32) {
    %c0_i32 = arith.constant 0 : i32
    %c0_i32_0 = arith.constant 0 : i32
    %c0_i32_1 = arith.constant 0 : i32
    return %arg0, %c0_i32, %c0_i32_0 : i32, i32, i32
  }
  func.func @transform_2(%arg0: i32, %arg1: i32) -> (i32, i32) {
    %c0_i32 = arith.constant 0 : i32
    %c0_i32_0 = arith.constant 0 : i32
    %c0_i32_1 = arith.constant 0 : i32
    return %c0_i32, %c0_i32_0 : i32, i32
  }
  func.func @transform_3(%arg0: i32, %arg1: i32) -> (i32, i32) {
    %c0_i32 = arith.constant 0 : i32
    %c0_i32_0 = arith.constant 0 : i32
    %c0_i32_1 = arith.constant 0 : i32
    return %c0_i32, %c0_i32_0 : i32, i32
  }
  func.func @transform_4(%arg0: i32, %arg1: i32) -> (i32, i32) {
    %c0_i32 = arith.constant 0 : i32
    %c0_i32_0 = arith.constant 0 : i32
    %c0_i32_1 = arith.constant 0 : i32
    return %c0_i32, %c0_i32_0 : i32, i32
  }
  func.func @transform_5(%arg0: i32, %arg1: i32) -> (i32, i32) {
    %c0_i32 = arith.constant 0 : i32
    %c0_i32_0 = arith.constant 0 : i32
    %c0_i32_1 = arith.constant 0 : i32
    return %c0_i32, %c0_i32_0 : i32, i32
  }
  func.func @transform_6(%arg0: i32, %arg1: i32) -> (i32, i32) {
    %c0_i32 = arith.constant 0 : i32
    %c0_i32_0 = arith.constant 0 : i32
    %c0_i32_1 = arith.constant 0 : i32
    return %c0_i32, %c0_i32_0 : i32, i32
  }
  func.func @transform_7(%arg0: i32, %arg1: i32) -> (i32, i32) {
    %c0_i32 = arith.constant 0 : i32
    %c0_i32_0 = arith.constant 0 : i32
    %c0_i32_1 = arith.constant 0 : i32
    return %c0_i32, %c0_i32_0 : i32, i32
  }
  func.func @transform_8(%arg0: i32, %arg1: i32) -> (i32, i32, i32) {
    %c0_i32 = arith.constant 0 : i32
    %c0_i32_0 = arith.constant 0 : i32
    return %arg0, %arg1, %c0_i32 : i32, i32, i32
  }
  func.func @transform_9(%arg0: i32, %arg1: i32) -> (i32, i32, i32) {
    %c0_i32 = arith.constant 0 : i32
    %c0_i32_0 = arith.constant 0 : i32
    return %arg0, %arg1, %c0_i32 : i32, i32, i32
  }
}

module attributes {stable_mosaic.version = 11 : i64} {
  func.func @attention_kernel(%arg0: i32, %arg1: i32, %arg2: memref<1x8x32xf32, #tpu.memory_space<vmem>>, %arg3: memref<1x8x16xf32, #tpu.memory_space<vmem>>, %arg4: memref<32x32xf32, #tpu.memory_space<vmem>>, %arg5: memref<1x32xf32, #tpu.memory_space<vmem>>, %arg6: memref<16x32xf32, #tpu.memory_space<vmem>>, %arg7: memref<1x32xf32, #tpu.memory_space<vmem>>, %arg8: memref<16x32xf32, #tpu.memory_space<vmem>>, %arg9: memref<1x32xf32, #tpu.memory_space<vmem>>, %arg10: memref<1x8x32xf32, #tpu.memory_space<vmem>>, %arg11: memref<1x8x8xf32, #tpu.memory_space<vmem>>, %arg12: memref<1x8x32xf32, #tpu.memory_space<vmem>>, %arg13: memref<1x8x32xf32, #tpu.memory_space<vmem>>) attributes {dimension_semantics = [#tpu.dimension_semantics<parallel>, #tpu.dimension_semantics<arbitrary>], iteration_bounds = array<i64: 2, 1>, scalar_prefetch = 0 : i64, scratch_operands = 2 : i64, tpu.core_type = #tpu.core_type<tc>, window_params = [{transform_indices = @transform_0, window_bounds = array<i64: 1, 8, 32>}, {transform_indices = @transform_1, window_bounds = array<i64: 1, 8, 16>}, {pipeline_mode = #tpu.pipeline_mode<synchronous>, transform_indices = @transform_2, window_bounds = array<i64: 32, 32>}, {pipeline_mode = #tpu.pipeline_mode<synchronous>, transform_indices = @transform_3, window_bounds = array<i64: 1, 32>}, {pipeline_mode = #tpu.pipeline_mode<synchronous>, transform_indices = @transform_4, window_bounds = array<i64: 16, 32>}, {pipeline_mode = #tpu.pipeline_mode<synchronous>, transform_indices = @transform_5, window_bounds = array<i64: 1, 32>}, {pipeline_mode = #tpu.pipeline_mode<synchronous>, transform_indices = @transform_6, window_bounds = array<i64: 16, 32>}, {pipeline_mode = #tpu.pipeline_mode<synchronous>, transform_indices = @transform_7, window_bounds = array<i64: 1, 32>}, {transform_indices = @transform_8, window_bounds = array<i64: 1, 8, 32>}, {transform_indices = @transform_9, window_bounds = array<i64: 1, 8, 8>}]} {
    %c0_i32 = arith.constant 0 : i32
    %0 = arith.cmpi eq, %arg1, %c0_i32 : i32
    %1 = arith.extui %0 : i1 to i32
    %c0_i32_0 = arith.constant 0 : i32
    %2 = arith.cmpi ne, %1, %c0_i32_0 : i32
    scf.if %2 {
      %c0_23 = arith.constant 0 : index
      %c0_24 = arith.constant 0 : index
      %c0_25 = arith.constant 0 : index
      %28 = vector.load %arg3[%c0_23, %c0_24, %c0_25] : memref<1x8x16xf32, #tpu.memory_space<vmem>>, vector<1x8x16xf32>
      %29 = vector.shape_cast %28 : vector<1x8x16xf32> to vector<8x16xf32>
      %c0_26 = arith.constant 0 : index
      %c0_27 = arith.constant 0 : index
      %30 = vector.load %arg6[%c0_26, %c0_27] : memref<16x32xf32, #tpu.memory_space<vmem>>, vector<16x32xf32>
      %cst_28 = arith.constant dense<0.000000e+00> : vector<8x32xf32>
      %31 = tpu.matmul %29, %30, %cst_28 {dimension_numbers = #tpu.dot_dimension_numbers<[1], [0], [0], [1], [0, 0, 1, 1], [], []>} : vector<8x16xf32>, vector<16x32xf32>, vector<8x32xf32> -> vector<8x32xf32>
      %c0_29 = arith.constant 0 : index
      %c0_30 = arith.constant 0 : index
      %32 = vector.load %arg7[%c0_29, %c0_30] : memref<1x32xf32, #tpu.memory_space<vmem>>, vector<1x32xf32>
      %33 = vector.broadcast %32 : vector<1x32xf32> to vector<8x32xf32>
      %34 = arith.addf %31, %33 : vector<8x32xf32>
      %c0_31 = arith.constant 0 : index
      %c0_32 = arith.constant 0 : index
      %35 = vector.load %arg8[%c0_31, %c0_32] : memref<16x32xf32, #tpu.memory_space<vmem>>, vector<16x32xf32>
      %cst_33 = arith.constant dense<0.000000e+00> : vector<8x32xf32>
      %36 = tpu.matmul %29, %35, %cst_33 {dimension_numbers = #tpu.dot_dimension_numbers<[1], [0], [0], [1], [0, 0, 1, 1], [], []>} : vector<8x16xf32>, vector<16x32xf32>, vector<8x32xf32> -> vector<8x32xf32>
      %c0_34 = arith.constant 0 : index
      %c0_35 = arith.constant 0 : index
      %37 = vector.load %arg9[%c0_34, %c0_35] : memref<1x32xf32, #tpu.memory_space<vmem>>, vector<1x32xf32>
      %38 = vector.broadcast %37 : vector<1x32xf32> to vector<8x32xf32>
      %39 = arith.addf %36, %38 : vector<8x32xf32>
      %40 = vector.shape_cast %34 : vector<8x32xf32> to vector<1x8x32xf32>
      %c0_36 = arith.constant 0 : index
      %c0_37 = arith.constant 0 : index
      %c0_38 = arith.constant 0 : index
      %41 = vector.load %arg12[%c0_36, %c0_37, %c0_38] : memref<1x8x32xf32, #tpu.memory_space<vmem>>, vector<1x8x32xf32>
      tpu.vector_store %arg12[%c0_36, %c0_37, %c0_38], %40 {strides = array<i32>} : memref<1x8x32xf32, #tpu.memory_space<vmem>>, vector<1x8x32xf32>,
      %42 = vector.shape_cast %39 : vector<8x32xf32> to vector<1x8x32xf32>
      %c0_39 = arith.constant 0 : index
      %c0_40 = arith.constant 0 : index
      %c0_41 = arith.constant 0 : index
      %43 = vector.load %arg13[%c0_39, %c0_40, %c0_41] : memref<1x8x32xf32, #tpu.memory_space<vmem>>, vector<1x8x32xf32>
      tpu.vector_store %arg13[%c0_39, %c0_40, %c0_41], %42 {strides = array<i32>} : memref<1x8x32xf32, #tpu.memory_space<vmem>>, vector<1x8x32xf32>,
    } else {
    }
    %c0 = arith.constant 0 : index
    %c0_1 = arith.constant 0 : index
    %c0_2 = arith.constant 0 : index
    %3 = vector.load %arg2[%c0, %c0_1, %c0_2] : memref<1x8x32xf32, #tpu.memory_space<vmem>>, vector<1x8x32xf32>
    %4 = vector.shape_cast %3 : vector<1x8x32xf32> to vector<8x32xf32>
    %c0_3 = arith.constant 0 : index
    %c0_4 = arith.constant 0 : index
    %5 = vector.load %arg4[%c0_3, %c0_4] : memref<32x32xf32, #tpu.memory_space<vmem>>, vector<32x32xf32>
    %cst = arith.constant dense<0.000000e+00> : vector<8x32xf32>
    %6 = tpu.matmul %4, %5, %cst {dimension_numbers = #tpu.dot_dimension_numbers<[1], [0], [0], [1], [0, 0, 1, 1], [], []>} : vector<8x32xf32>, vector<32x32xf32>, vector<8x32xf32> -> vector<8x32xf32>
    %c0_5 = arith.constant 0 : index
    %c0_6 = arith.constant 0 : index
    %7 = vector.load %arg5[%c0_5, %c0_6] : memref<1x32xf32, #tpu.memory_space<vmem>>, vector<1x32xf32>
    %8 = vector.broadcast %7 : vector<1x32xf32> to vector<8x32xf32>
    %9 = arith.addf %6, %8 : vector<8x32xf32>
    %10 = vector.shape_cast %9 : vector<8x32xf32> to vector<1x8x32xf32>
    %c0_7 = arith.constant 0 : index
    %c0_8 = arith.constant 0 : index
    %c0_9 = arith.constant 0 : index
    %11 = vector.load %arg12[%c0_7, %c0_8, %c0_9] : memref<1x8x32xf32, #tpu.memory_space<vmem>>, vector<1x8x32xf32>
    %c0_10 = arith.constant 0 : index
    %c0_11 = arith.constant 0 : index
    %c0_12 = arith.constant 0 : index
    %12 = vector.load %arg13[%c0_10, %c0_11, %c0_12] : memref<1x8x32xf32, #tpu.memory_space<vmem>>, vector<1x8x32xf32>
    "tpu.trace_start"() <{level = 10 : i32, message = "bqd,bkd->bqk"}> : () -> ()
    %cst_13 = arith.constant dense<0.000000e+00> : vector<1x8x8xf32>
    %13 = tpu.matmul %10, %11, %cst_13 {dimension_numbers = #tpu.dot_dimension_numbers<[2], [2], [1], [1], [0, 0, 0, 1, 1, 1], [0], [0]>} : vector<1x8x32xf32>, vector<1x8x32xf32>, vector<1x8x8xf32> -> vector<1x8x8xf32>
    "tpu.trace_stop"() : () -> ()
    %cst_14 = arith.constant dense<0xFF800000> : vector<1x8xf32>
    %14 = vector.multi_reduction <maximumf>, %13, %cst_14 [2] : vector<1x8x8xf32> to vector<1x8xf32>
    %15 = vector.shape_cast %14 : vector<1x8xf32> to vector<1x8x1xf32>
    %16 = vector.broadcast %15 : vector<1x8x1xf32> to vector<1x8x8xf32>
    %17 = arith.subf %13, %16 : vector<1x8x8xf32>
    %18 = math.exp %17 : vector<1x8x8xf32>
    %cst_15 = arith.constant dense<0.000000e+00> : vector<1x8xf32>
    %19 = vector.multi_reduction <add>, %18, %cst_15 [2] : vector<1x8x8xf32> to vector<1x8xf32>
    %20 = vector.shape_cast %19 : vector<1x8xf32> to vector<1x8x1xf32>
    %21 = tpu.reciprocal %20 {approx = true} : vector<1x8x1xf32> -> vector<1x8x1xf32>
    %22 = vector.broadcast %21 : vector<1x8x1xf32> to vector<1x8x8xf32>
    %23 = arith.mulf %18, %22 : vector<1x8x8xf32>
    "tpu.trace_start"() <{level = 10 : i32, message = "bqk,bkd->bqd"}> : () -> ()
    %cst_16 = arith.constant dense<0.000000e+00> : vector<1x8x32xf32>
    %24 = tpu.matmul %23, %12, %cst_16 {dimension_numbers = #tpu.dot_dimension_numbers<[2], [1], [1], [2], [0, 0, 0, 1, 1, 2], [0], [0]>} : vector<1x8x8xf32>, vector<1x8x32xf32>, vector<1x8x32xf32> -> vector<1x8x32xf32>
    "tpu.trace_stop"() : () -> ()
    %25 = arith.addf %3, %24 : vector<1x8x32xf32>
    %c0_17 = arith.constant 0 : index
    %c0_18 = arith.constant 0 : index
    %c0_19 = arith.constant 0 : index
    %26 = vector.load %arg10[%c0_17, %c0_18, %c0_19] : memref<1x8x32xf32, #tpu.memory_space<vmem>>, vector<1x8x32xf32>
    tpu.vector_store %arg10[%c0_17, %c0_18, %c0_19], %25 {strides = array<i32>} : memref<1x8x32xf32, #tpu.memory_space<vmem>>, vector<1x8x32xf32>,
    %c0_20 = arith.constant 0 : index
    %c0_21 = arith.constant 0 : index
    %c0_22 = arith.constant 0 : index
    %27 = vector.load %arg11[%c0_20, %c0_21, %c0_22] : memref<1x8x8xf32, #tpu.memory_space<vmem>>, vector<1x8x8xf32>
    tpu.vector_store %arg11[%c0_20, %c0_21, %c0_22], %23 {strides = array<i32>} : memref<1x8x8xf32, #tpu.memory_space<vmem>>, vector<1x8x8xf32>,
    return
  }
  func.func @transform_0(%arg0: i32, %arg1: i32) -> (i32, i32, i32) {
    %c0_i32 = arith.constant 0 : i32
    %c0_i32_0 = arith.constant 0 : i32
    return %arg0, %arg1, %c0_i32 : i32, i32, i32
  }
  func.func @transform_1(%arg0: i32, %arg1: i32) -> (i32, i32, i32) {
    %c0_i32 = arith.constant 0 : i32
    %c0_i32_0 = arith.constant 0 : i32
    %c0_i32_1 = arith.constant 0 : i32
    return %arg0, %c0_i32, %c0_i32_0 : i32, i32, i32
  }
  func.func @transform_2(%arg0: i32, %arg1: i32) -> (i32, i32) {
    %c0_i32 = arith.constant 0 : i32
    %c0_i32_0 = arith.constant 0 : i32
    %c0_i32_1 = arith.constant 0 : i32
    return %c0_i32, %c0_i32_0 : i32, i32
  }
  func.func @transform_3(%arg0: i32, %arg1: i32) -> (i32, i32) {
    %c0_i32 = arith.constant 0 : i32
    %c0_i32_0 = arith.constant 0 : i32
    %c0_i32_1 = arith.constant 0 : i32
    return %c0_i32, %c0_i32_0 : i32, i32
  }
  func.func @transform_4(%arg0: i32, %arg1: i32) -> (i32, i32) {
    %c0_i32 = arith.constant 0 : i32
    %c0_i32_0 = arith.constant 0 : i32
    %c0_i32_1 = arith.constant 0 : i32
    return %c0_i32, %c0_i32_0 : i32, i32
  }
  func.func @transform_5(%arg0: i32, %arg1: i32) -> (i32, i32) {
    %c0_i32 = arith.constant 0 : i32
    %c0_i32_0 = arith.constant 0 : i32
    %c0_i32_1 = arith.constant 0 : i32
    return %c0_i32, %c0_i32_0 : i32, i32
  }
  func.func @transform_6(%arg0: i32, %arg1: i32) -> (i32, i32) {
    %c0_i32 = arith.constant 0 : i32
    %c0_i32_0 = arith.constant 0 : i32
    %c0_i32_1 = arith.constant 0 : i32
    return %c0_i32, %c0_i32_0 : i32, i32
  }
  func.func @transform_7(%arg0: i32, %arg1: i32) -> (i32, i32) {
    %c0_i32 = arith.constant 0 : i32
    %c0_i32_0 = arith.constant 0 : i32
    %c0_i32_1 = arith.constant 0 : i32
    return %c0_i32, %c0_i32_0 : i32, i32
  }
  func.func @transform_8(%arg0: i32, %arg1: i32) -> (i32, i32, i32) {
    %c0_i32 = arith.constant 0 : i32
    %c0_i32_0 = arith.constant 0 : i32
    return %arg0, %arg1, %c0_i32 : i32, i32, i32
  }
  func.func @transform_9(%arg0: i32, %arg1: i32) -> (i32, i32, i32) {
    %c0_i32 = arith.constant 0 : i32
    %c0_i32_0 = arith.constant 0 : i32
    return %arg0, %arg1, %c0_i32 : i32, i32, i32
  }
}

</mosaic_0001>

<llo_original>
// kernel: tpu_custom_call.1
$region0: #{tpu_custom_call.1}
  #allocation0 [shape = 'u32[]', space=smem, size = 0x4, offset = 0x4, fixed_abs, tag = 'smem constant byte address 0x4 - core index']
  #allocation1 [shape = 'u32[144,128]{1,0:T(1,128)}', space=vmem, size = 0x12000, scoped, tag = 'internal scratch']
  #allocation2 [shape = 'f32[1,8,32]{2,1,0:T(8,128)}', space=vmem, size = 0x1000, scoped, tag = 'scratch operand']
  #allocation3 [shape = 'f32[1,8,32]{2,1,0:T(8,128)}', space=vmem, size = 0x1000, scoped, tag = 'scratch operand']
  %s0 = inlined_call_operand.hbm [shape: f32[2,8,32], index: 0, kind: input, shape index: {}]
  %s1 = inlined_call_operand.hbm [shape: f32[2,8,16], index: 1, kind: input, shape index: {}]
  %s2 = inlined_call_operand.hbm [shape: f32[32,32], index: 2, kind: input, shape index: {}]
  %s3 = inlined_call_operand.hbm [shape: f32[1,32], index: 3, kind: input, shape index: {}]
  %s4 = inlined_call_operand.hbm [shape: f32[16,32], index: 4, kind: input, shape index: {}]
  %s5 = inlined_call_operand.hbm [shape: f32[1,32], index: 5, kind: input, shape index: {}]
  %s6 = inlined_call_operand.hbm [shape: f32[16,32], index: 6, kind: input, shape index: {}]
  %s7 = inlined_call_operand.hbm [shape: f32[1,32], index: 7, kind: input, shape index: {}]
  %s8 = inlined_call_operand.hbm [shape: f32[2,8,32], index: 8, kind: output, shape index: {0}]
  %s9 = inlined_call_operand.hbm [shape: f32[2,8,8], index: 9, kind: output, shape index: {1}]
  %10 = xla_tuple %s8, %s9
  %s11 = sld [smem:[#allocation0]]
  $region109: #{tpu_custom_call.1} parent=0
    _
  %s13 = ssub.s32 1, %s11
  %s14 = scalar_select 0, %s13, %s11
  $region1: #{tpu_custom_call.1} parent=0
    #allocation4 [shape = 'u8[8192]{0}', space=vmem, size = 0x2000, scoped, tag = 'input window, operand 0']
    #allocation5 [shape = 's32[2]{0}', space=sflag, size = 0x8, scoped, tag = 'scoped memory for tpu_custom_call.1']
    #allocation6 [shape = 's32[2]{0}', space=sflag, size = 0x8, scoped, tag = 'scoped memory for tpu_custom_call.1']
    #allocation7 [shape = 'u8[8192]{0}', space=vmem, size = 0x2000, scoped, tag = 'input window, operand 1']
    #allocation8 [shape = 's32[2]{0}', space=sflag, size = 0x8, scoped, tag = 'scoped memory for tpu_custom_call.1']
    #allocation9 [shape = 'u8[16384]{0}', space=vmem, size = 0x4000, scoped, tag = 'input window, operand 2, single buffered']
    #allocation10 [shape = 'u8[512]{0}', space=vmem, size = 0x400, scoped, tag = 'input window, operand 3, single buffered']
    #allocation11 [shape = 's32[1]{0}', space=sflag, size = 0x4, scoped, tag = 'scoped memory for tpu_custom_call.1']
    #allocation12 [shape = 'u8[8192]{0}', space=vmem, size = 0x2000, scoped, tag = 'input window, operand 4, single buffered']
    #allocation13 [shape = 'u8[512]{0}', space=vmem, size = 0x400, scoped, tag = 'input window, operand 5, single buffered']
    #allocation14 [shape = 's32[1]{0}', space=sflag, size = 0x4, scoped, tag = 'scoped memory for tpu_custom_call.1']
    #allocation15 [shape = 'u8[8192]{0}', space=vmem, size = 0x2000, scoped, tag = 'input window, operand 6, single buffered']
    #allocation16 [shape = 'u8[512]{0}', space=vmem, size = 0x400, scoped, tag = 'input window, operand 7, single buffered']
    #allocation17 [shape = 's32[1]{0}', space=sflag, size = 0x4, scoped, tag = 'scoped memory for tpu_custom_call.1']
    #allocation18 [shape = 'u8[8192]{0}', space=vmem, size = 0x2000, scoped, tag = 'output window, operand 0']
    #allocation19 [shape = 'u8[8192]{0}', space=vmem, size = 0x2000, scoped, tag = 'output window, operand 1']
    #allocation20 [shape = 's32[2]{0}', space=sflag, size = 0x8, scoped, tag = 'scoped memory for tpu_custom_call.1']
    %15 = vsyncpa [#allocation5], 0
    %s16 = scalar_lea.sflag [#allocation5], 1
    %17 = vsyncpa %s16, 0
    %18 = vsyncpa [#allocation8], 0
    %s19 = scalar_lea.sflag [#allocation8], 1
    %20 = vsyncpa %s19, 0
    %21 = vsyncpa [#allocation11], 0
    %22 = vsyncpa [#allocation14], 0
    %23 = vsyncpa [#allocation17], 0
    %24 = vsyncpa [#allocation6], 0
    %s25 = scalar_lea.sflag [#allocation6], 1
    %26 = vsyncpa %s25, 0
    %27 = vsyncpa [#allocation20], 0
    %s28 = scalar_lea.sflag [#allocation20], 1
    %29 = vsyncpa %s28, 0
    loop: start=0, step=1, limit=4
    $region2: #{tpu_custom_call.1} parent=1 // loop_pre_header
      _
    $region3: #{tpu_custom_call.1} parent=1 // loop_header
      %s31 = sphi 0, %s35
      %p32 = scmp.ge.s32.totalorder %s31, 4
      %s38 = sphi 0, %s50
      %s39 = sphi 0, %s46
      %s40 = sphi 0, %s38
      %s41 = sphi 0, %s39
      %s42 = sphi 0, %s40
      %s43 = sphi 0, %s41
      %s55 = sphi 0, %s57
      %s58 = sphi 0, %s55
      %s59 = sphi 0, %s58
      %s75 = sphi 0, %s59
      %s81 = sphi 0, %s83
      %s84 = sphi 0, %s81
      %s85 = sphi 0, %s84
      %s101 = sphi 0, %s85
      %s105 = sphi 0, %s105
      %s107 = sphi 0, %s105
      %s108 = sphi 0, %s107
      %s122 = sphi 0, %s108
      %s126 = sphi 0, %s126
      %s128 = sphi 0, %s126
      %s129 = sphi 0, %s128
      %s143 = sphi 0, %s129
      %s147 = sphi 0, %s147
      %s149 = sphi 0, %s147
      %s150 = sphi 0, %s149
      %s164 = sphi 0, %s150
      %s168 = sphi 0, %s168
      %s170 = sphi 0, %s168
      %s171 = sphi 0, %s170
      %s185 = sphi 0, %s171
      %s189 = sphi 0, %s189
      %s191 = sphi 0, %s189
      %s192 = sphi 0, %s191
      %s206 = sphi 0, %s192
      %s210 = sphi 0, %s210
      %s212 = sphi 0, %s210
      %s213 = sphi 0, %s212
      %s227 = sphi 0, %s213
      %s235 = sphi 0, %s237
      %s238 = sphi 0, %s235
      %s239 = sphi 0, %s238
      %s255 = sphi 0, %s239
      %s263 = sphi 0, %s265
      %s266 = sphi 0, %s263
      %s267 = sphi 0, %s266
      %s283 = sphi 0, %s267
    $region4: #{tpu_custom_call.1} parent=1 // loop_header_branch
      %34 = sbr.rel (%p32) target = $region8
    $region5: #{tpu_custom_call.1} parent=1 // loop_body
      %s36 = ssub.s32 %s31, 1
      %s37 = ssub.s32 %s31, 2
      %s44 = sadd.s32 1, %s39
      %p45 = scmp.ge.s32.totalorder %s44, 1
      %s46 = scalar_select %p45, 0, %s44
      %s47 = sadd.s32 1, %s38
      %s48 = scalar_select %p45, %s47, %s38
      %p49 = scmp.ge.s32.totalorder %s48, 2
      %s50 = scalar_select %p49, 0, %s48
      %s51 = ssub.s32 %s38, %s50
      %s52 = ssub.s32 %s39, %s46
      %s53 = sor.u32 %s51, %s52
      %p54 = scmp.eq.s32.totalorder %s53, 0
      %s56 = sadd.s32 %s55, 1
      %s57 = scalar_select %p54, %s55, %s56
      %p60 = pneg %p54
      %p61 = scmp.eq.s32.totalorder %s31, 1
      %p62 = por %p60, %p61
      %p63 = scmp.ne.s32.totalorder %s55, %s58
      %p64 = scmp.eq.s32.totalorder %s31, 0
      %p65 = por %p63, %p64
      %p66 = scmp.ne.s32.totalorder %s55, %s58
      %p67 = scmp.eq.s32.totalorder %s36, 1
      %p68 = por %p66, %p67
      %p69 = scmp.ne.s32.totalorder %s58, %s59
      %p70 = scmp.eq.s32.totalorder %s36, 0
      %p71 = por %p69, %p70
      %p72 = scmp.ne.s32.totalorder %s58, %s59
      %p73 = scmp.eq.s32.totalorder %s37, 1
      %p74 = por %p72, %p73
      %p76 = scmp.ne.s32.totalorder %s59, %s75
      %p77 = scmp.eq.s32.totalorder %s37, 0
      %p78 = por %p76, %p77
      %s79 = ssub.s32 %s38, %s50
      %p80 = scmp.eq.s32.totalorder %s79, 0
      %s82 = sadd.s32 %s81, 1
      %s83 = scalar_select %p80, %s81, %s82
      %p86 = pneg %p80
      %p87 = scmp.eq.s32.totalorder %s31, 1
      %p88 = por %p86, %p87
      %p89 = scmp.ne.s32.totalorder %s81, %s84
      %p90 = scmp.eq.s32.totalorder %s31, 0
      %p91 = por %p89, %p90
      %p92 = scmp.ne.s32.totalorder %s81, %s84
      %p93 = scmp.eq.s32.totalorder %s36, 1
      %p94 = por %p92, %p93
      %p95 = scmp.ne.s32.totalorder %s84, %s85
      %p96 = scmp.eq.s32.totalorder %s36, 0
      %p97 = por %p95, %p96
      %p98 = scmp.ne.s32.totalorder %s84, %s85
      %p99 = scmp.eq.s32.totalorder %s37, 1
      %p100 = por %p98, %p99
      %p102 = scmp.ne.s32.totalorder %s85, %s101
      %p103 = scmp.eq.s32.totalorder %s37, 0
      %p104 = por %p102, %p103
      %s106 = sadd.s32 %s105, 1
      %p109 = scmp.eq.s32.totalorder %s31, 1
      %p110 = scmp.ne.s32.totalorder %s105, %s107
      %p111 = scmp.eq.s32.totalorder %s31, 0
      %p112 = por %p110, %p111
      %p113 = scmp.ne.s32.totalorder %s105, %s107
      %p114 = scmp.eq.s32.totalorder %s36, 1
      %p115 = por %p113, %p114
      %p116 = scmp.ne.s32.totalorder %s107, %s108
      %p117 = scmp.eq.s32.totalorder %s36, 0
      %p118 = por %p116, %p117
      %p119 = scmp.ne.s32.totalorder %s107, %s108
      %p120 = scmp.eq.s32.totalorder %s37, 1
      %p121 = por %p119, %p120
      %p123 = scmp.ne.s32.totalorder %s108, %s122
      %p124 = scmp.eq.s32.totalorder %s37, 0
      %p125 = por %p123, %p124
      %s127 = sadd.s32 %s126, 1
      %p130 = scmp.eq.s32.totalorder %s31, 1
      %p131 = scmp.ne.s32.totalorder %s126, %s128
      %p132 = scmp.eq.s32.totalorder %s31, 0
      %p133 = por %p131, %p132
      %p134 = scmp.ne.s32.totalorder %s126, %s128
      %p135 = scmp.eq.s32.totalorder %s36, 1
      %p136 = por %p134, %p135
      %p137 = scmp.ne.s32.totalorder %s128, %s129
      %p138 = scmp.eq.s32.totalorder %s36, 0
      %p139 = por %p137, %p138
      %p140 = scmp.ne.s32.totalorder %s128, %s129
      %p141 = scmp.eq.s32.totalorder %s37, 1
      %p142 = por %p140, %p141
      %p144 = scmp.ne.s32.totalorder %s129, %s143
      %p145 = scmp.eq.s32.totalorder %s37, 0
      %p146 = por %p144, %p145
      %s148 = sadd.s32 %s147, 1
      %p151 = scmp.eq.s32.totalorder %s31, 1
      %p152 = scmp.ne.s32.totalorder %s147, %s149
      %p153 = scmp.eq.s32.totalorder %s31, 0
      %p154 = por %p152, %p153
      %p155 = scmp.ne.s32.totalorder %s147, %s149
      %p156 = scmp.eq.s32.totalorder %s36, 1
      %p157 = por %p155, %p156
      %p158 = scmp.ne.s32.totalorder %s149, %s150
      %p159 = scmp.eq.s32.totalorder %s36, 0
      %p160 = por %p158, %p159
      %p161 = scmp.ne.s32.totalorder %s149, %s150
      %p162 = scmp.eq.s32.totalorder %s37, 1
      %p163 = por %p161, %p162
      %p165 = scmp.ne.s32.totalorder %s150, %s164
      %p166 = scmp.eq.s32.totalorder %s37, 0
      %p167 = por %p165, %p166
      %s169 = sadd.s32 %s168, 1
      %p172 = scmp.eq.s32.totalorder %s31, 1
      %p173 = scmp.ne.s32.totalorder %s168, %s170
      %p174 = scmp.eq.s32.totalorder %s31, 0
      %p175 = por %p173, %p174
      %p176 = scmp.ne.s32.totalorder %s168, %s170
      %p177 = scmp.eq.s32.totalorder %s36, 1
      %p178 = por %p176, %p177
      %p179 = scmp.ne.s32.totalorder %s170, %s171
      %p180 = scmp.eq.s32.totalorder %s36, 0
      %p181 = por %p179, %p180
      %p182 = scmp.ne.s32.totalorder %s170, %s171
      %p183 = scmp.eq.s32.totalorder %s37, 1
      %p184 = por %p182, %p183
      %p186 = scmp.ne.s32.totalorder %s171, %s185
      %p187 = scmp.eq.s32.totalorder %s37, 0
      %p188 = por %p186, %p187
      %s190 = sadd.s32 %s189, 1
      %p193 = scmp.eq.s32.totalorder %s31, 1
      %p194 = scmp.ne.s32.totalorder %s189, %s191
      %p195 = scmp.eq.s32.totalorder %s31, 0
      %p196 = por %p194, %p195
      %p197 = scmp.ne.s32.totalorder %s189, %s191
      %p198 = scmp.eq.s32.totalorder %s36, 1
      %p199 = por %p197, %p198
      %p200 = scmp.ne.s32.totalorder %s191, %s192
      %p201 = scmp.eq.s32.totalorder %s36, 0
      %p202 = por %p200, %p201
      %p203 = scmp.ne.s32.totalorder %s191, %s192
      %p204 = scmp.eq.s32.totalorder %s37, 1
      %p205 = por %p203, %p204
      %p207 = scmp.ne.s32.totalorder %s192, %s206
      %p208 = scmp.eq.s32.totalorder %s37, 0
      %p209 = por %p207, %p208
      %s211 = sadd.s32 %s210, 1
      %p214 = scmp.eq.s32.totalorder %s31, 1
      %p215 = scmp.ne.s32.totalorder %s210, %s212
      %p216 = scmp.eq.s32.totalorder %s31, 0
      %p217 = por %p215, %p216
      %p218 = scmp.ne.s32.totalorder %s210, %s212
      %p219 = scmp.eq.s32.totalorder %s36, 1
      %p220 = por %p218, %p219
      %p221 = scmp.ne.s32.totalorder %s212, %s213
      %p222 = scmp.eq.s32.totalorder %s36, 0
      %p223 = por %p221, %p222
      %p224 = scmp.ne.s32.totalorder %s212, %s213
      %p225 = scmp.eq.s32.totalorder %s37, 1
      %p226 = por %p224, %p225
      %p228 = scmp.ne.s32.totalorder %s213, %s227
      %p229 = scmp.eq.s32.totalorder %s37, 0
      %p230 = por %p228, %p229
      %s231 = ssub.s32 %s38, %s50
      %s232 = ssub.s32 %s39, %s46
      %s233 = sor.u32 %s231, %s232
      %p234 = scmp.eq.s32.totalorder %s233, 0
      %s236 = sadd.s32 %s235, 1
      %s237 = scalar_select %p234, %s235, %s236
      %p240 = pneg %p234
      %p241 = scmp.eq.s32.totalorder %s31, 1
      %p242 = por %p240, %p241
      %p243 = scmp.ne.s32.totalorder %s235, %s238
      %p244 = scmp.eq.s32.totalorder %s31, 0
      %p245 = por %p243, %p244
      %p246 = scmp.ne.s32.totalorder %s235, %s238
      %p247 = scmp.eq.s32.totalorder %s36, 1
      %p248 = por %p246, %p247
      %p249 = scmp.ne.s32.totalorder %s238, %s239
      %p250 = scmp.eq.s32.totalorder %s36, 0
      %p251 = por %p249, %p250
      %p252 = scmp.ne.s32.totalorder %s238, %s239
      %p253 = scmp.eq.s32.totalorder %s37, 1
      %p254 = por %p252, %p253
      %p256 = scmp.ne.s32.totalorder %s239, %s255
      %p257 = scmp.eq.s32.totalorder %s37, 0
      %p258 = por %p256, %p257
      %s259 = ssub.s32 %s38, %s50
      %s260 = ssub.s32 %s39, %s46
      %s261 = sor.u32 %s259, %s260
      %p262 = scmp.eq.s32.totalorder %s261, 0
      %s264 = sadd.s32 %s263, 1
      %s265 = scalar_select %p262, %s263, %s264
      %p268 = pneg %p262
      %p269 = scmp.eq.s32.totalorder %s31, 1
      %p270 = por %p268, %p269
      %p271 = scmp.ne.s32.totalorder %s263, %s266
      %p272 = scmp.eq.s32.totalorder %s31, 0
      %p273 = por %p271, %p272
      %p274 = scmp.ne.s32.totalorder %s263, %s266
      %p275 = scmp.eq.s32.totalorder %s36, 1
      %p276 = por %p274, %p275
      %p277 = scmp.ne.s32.totalorder %s266, %s267
      %p278 = scmp.eq.s32.totalorder %s36, 0
      %p279 = por %p277, %p278
      %p280 = scmp.ne.s32.totalorder %s266, %s267
      %p281 = scmp.eq.s32.totalorder %s37, 1
      %p282 = por %p280, %p281
      %p284 = scmp.ne.s32.totalorder %s267, %s283
      %p285 = scmp.eq.s32.totalorder %s37, 0
      %p286 = por %p284, %p285
      %p287 = scmp.le.s32.totalorder 1, %s31
      %p288 = scmp.lt.s32.totalorder %s31, 3
      %p289 = pnand %p287, %p288
      %p290 = pneg %p289
      // Predicated region
      $region9: #{tpu_custom_call.1} parent=5 // pred_check
        _
      $region10: #{tpu_custom_call.1} parent=5 // pred_check_branch
        %292 = sbr.rel (%p289) target = $region12
      $region11: #{tpu_custom_call.1} parent=5 // pred_region
        %s293 = ssub.s32 %s31, 1
        // Predicated region
        $region13: #{tpu_custom_call.1} parent=11 // pred_check
          %p294 = pneg %p118
        $region14: #{tpu_custom_call.1} parent=11 // pred_check_branch
          %296 = sbr.rel (%p294) target = $region16
        $region15: #{tpu_custom_call.1} parent=11 // pred_region
          %s298 = ssub.s32 512, 512
          %299 = vsyncadd [#allocation8], %s298
          %s300 = sshll.u32 [#allocation9], 4
          %s301 = int_to_ptr.vmem [resolvable:$true] %s300
          %306 = dma.hbm_to_vmem [thread:$0]  %s2, 512, %s301, [#allocation8], 128, 128, 8
        $region16: #{tpu_custom_call.1} parent=11 // pred_fallthru
          _
        // Predicated region
        $region17: #{tpu_custom_call.1} parent=11 // pred_check
          %p307 = pneg %p139
        $region18: #{tpu_custom_call.1} parent=11 // pred_check_branch
          %309 = sbr.rel (%p307) target = $region20
        $region19: #{tpu_custom_call.1} parent=11 // pred_region
          %s311 = ssub.s32 16, 16
          %312 = vsyncadd [#allocation11], %s311
          %s314 = sshll.u32 [#allocation10], 4
          %s315 = int_to_ptr.vmem [resolvable:$true] %s314
          %317 = dma.hbm_to_vmem [thread:$0]  %s3, 16, %s315, [#allocation11]
        $region20: #{tpu_custom_call.1} parent=11 // pred_fallthru
          _
        // Predicated region
        $region21: #{tpu_custom_call.1} parent=11 // pred_check
          %p318 = pneg %p160
        $region22: #{tpu_custom_call.1} parent=11 // pred_check_branch
          %320 = sbr.rel (%p318) target = $region24
        $region23: #{tpu_custom_call.1} parent=11 // pred_region
          %s322 = ssub.s32 256, 256
          %323 = vsyncadd [#allocation11], %s322
          %s324 = sshll.u32 [#allocation12], 4
          %s325 = int_to_ptr.vmem [resolvable:$true] %s324
          %330 = dma.hbm_to_vmem [thread:$0]  %s4, 256, %s325, [#allocation11], 128, 128, 8
        $region24: #{tpu_custom_call.1} parent=11 // pred_fallthru
          _
        // Predicated region
        $region25: #{tpu_custom_call.1} parent=11 // pred_check
          %p331 = pneg %p181
        $region26: #{tpu_custom_call.1} parent=11 // pred_check_branch
          %333 = sbr.rel (%p331) target = $region28
        $region27: #{tpu_custom_call.1} parent=11 // pred_region
          %s335 = ssub.s32 16, 16
          %336 = vsyncadd [#allocation14], %s335
          %s338 = sshll.u32 [#allocation13], 4
          %s339 = int_to_ptr.vmem [resolvable:$true] %s338
          %341 = dma.hbm_to_vmem [thread:$0]  %s5, 16, %s339, [#allocation14]
        $region28: #{tpu_custom_call.1} parent=11 // pred_fallthru
          _
        // Predicated region
        $region29: #{tpu_custom_call.1} parent=11 // pred_check
          %p342 = pneg %p202
        $region30: #{tpu_custom_call.1} parent=11 // pred_check_branch
          %344 = sbr.rel (%p342) target = $region32
        $region31: #{tpu_custom_call.1} parent=11 // pred_region
          %s346 = ssub.s32 256, 256
          %347 = vsyncadd [#allocation14], %s346
          %s348 = sshll.u32 [#allocation15], 4
          %s349 = int_to_ptr.vmem [resolvable:$true] %s348
          %354 = dma.hbm_to_vmem [thread:$0]  %s6, 256, %s349, [#allocation14], 128, 128, 8
        $region32: #{tpu_custom_call.1} parent=11 // pred_fallthru
          _
        // Predicated region
        $region33: #{tpu_custom_call.1} parent=11 // pred_check
          %p355 = pneg %p223
        $region34: #{tpu_custom_call.1} parent=11 // pred_check_branch
          %357 = sbr.rel (%p355) target = $region36
        $region35: #{tpu_custom_call.1} parent=11 // pred_region
          %s359 = ssub.s32 16, 16
          %360 = vsyncadd [#allocation17], %s359
          %s362 = sshll.u32 [#allocation16], 4
          %s363 = int_to_ptr.vmem [resolvable:$true] %s362
          %365 = dma.hbm_to_vmem [thread:$0]  %s7, 16, %s363, [#allocation17]
        $region36: #{tpu_custom_call.1} parent=11 // pred_fallthru
          _
      $region12: #{tpu_custom_call.1} parent=5 // pred_fallthru
        _
      %p366 = scmp.lt.s32.totalorder %s31, 2
      // Predicated region
      $region37: #{tpu_custom_call.1} parent=5 // pred_check
        %p367 = pneg %p366
      $region38: #{tpu_custom_call.1} parent=5 // pred_check_branch
        %369 = sbr.rel (%p367) target = $region40
      $region39: #{tpu_custom_call.1} parent=5 // pred_region
        // Predicated region
        $region41: #{tpu_custom_call.1} parent=39 // pred_check
          %p370 = pneg %p65
        $region42: #{tpu_custom_call.1} parent=39 // pred_check_branch
          %372 = sbr.rel (%p370) target = $region44
        $region43: #{tpu_custom_call.1} parent=39 // pred_region
          %s373 = sand.u32 %s55, 1
          %s374 = scalar_lea.sflag [#allocation5], %s373
          %s375 = sand.u32 %s55, 1
          %s376 = smul.addr %s375, 8
          %s377 = scalar_lea.vmem [#allocation4], %s376
          %s379 = ssub.s32 128, 128
          %380 = vsyncadd %s374, %s379
          %s381 = sadd.s32 %s39, %s38
          %s382 = smul.addr %s381, 128
          %s383 = scalar_lea.hbm %s0, %s382
          %s385 = sshll.u32 %s377, 4
          %s386 = int_to_ptr.vmem [resolvable:$true] %s385
          %388 = dma.hbm_to_vmem [thread:$0]  %s383, 128, %s386, %s374
        $region44: #{tpu_custom_call.1} parent=39 // pred_fallthru
          _
        // Predicated region
        $region45: #{tpu_custom_call.1} parent=39 // pred_check
          %p389 = pneg %p91
        $region46: #{tpu_custom_call.1} parent=39 // pred_check_branch
          %391 = sbr.rel (%p389) target = $region48
        $region47: #{tpu_custom_call.1} parent=39 // pred_region
          %s392 = sand.u32 %s31, 1
          %s393 = scalar_lea.sflag [#allocation8], %s392
          %s394 = sand.u32 %s81, 1
          %s395 = smul.addr %s394, 8
          %s396 = scalar_lea.vmem [#allocation7], %s395
          %s398 = ssub.s32 128, 128
          %399 = vsyncadd %s393, %s398
          %s400 = smul.addr %s38, 128
          %s401 = scalar_lea.hbm %s1, %s400
          %s403 = sshll.u32 %s396, 4
          %s404 = int_to_ptr.vmem [resolvable:$true] %s403
          %406 = dma.hbm_to_vmem [thread:$0]  %s401, 128, %s404, %s393
        $region48: #{tpu_custom_call.1} parent=39 // pred_fallthru
          _
      $region40: #{tpu_custom_call.1} parent=5 // pred_fallthru
        _
      %p407 = scmp.le.s32.totalorder 1, %s31
      %p408 = scmp.lt.s32.totalorder %s31, 3
      %p409 = pnand %p407, %p408
      %p410 = pneg %p409
      // Predicated region
      $region49: #{tpu_custom_call.1} parent=5 // pred_check
        _
      $region50: #{tpu_custom_call.1} parent=5 // pred_check_branch
        %412 = sbr.rel (%p409) target = $region52
      $region51: #{tpu_custom_call.1} parent=5 // pred_region
        %s413 = ssub.s32 %s31, 1
        %s414 = sand.u32 %s58, 1
        %s415 = scalar_lea.sflag [#allocation5], %s414
        %s416 = sand.u32 %s58, 1
        %s417 = smul.addr %s416, 8
        %s418 = scalar_lea.vmem [#allocation4], %s417
        // Predicated region
        $region53: #{tpu_custom_call.1} parent=51 // pred_check
          %p419 = pneg %p71
        $region54: #{tpu_custom_call.1} parent=51 // pred_check_branch
          %421 = sbr.rel (%p419) target = $region56
        $region55: #{tpu_custom_call.1} parent=51 // pred_region
          %422 = dma.done %s415, 128
        $region56: #{tpu_custom_call.1} parent=51 // pred_fallthru
          _
        %s423 = sand.u32 %s36, 1
        %s424 = scalar_lea.sflag [#allocation8], %s423
        %s425 = sand.u32 %s84, 1
        %s426 = smul.addr %s425, 8
        %s427 = scalar_lea.vmem [#allocation7], %s426
        // Predicated region
        $region57: #{tpu_custom_call.1} parent=51 // pred_check
          %p428 = pneg %p97
        $region58: #{tpu_custom_call.1} parent=51 // pred_check_branch
          %430 = sbr.rel (%p428) target = $region60
        $region59: #{tpu_custom_call.1} parent=51 // pred_region
          %431 = dma.done %s424, 128
        $region60: #{tpu_custom_call.1} parent=51 // pred_fallthru
          _
        // Predicated region
        $region61: #{tpu_custom_call.1} parent=51 // pred_check
          %p432 = pneg %p118
        $region62: #{tpu_custom_call.1} parent=51 // pred_check_branch
          %434 = sbr.rel (%p432) target = $region64
        $region63: #{tpu_custom_call.1} parent=51 // pred_region
          %435 = dma.done [#allocation8], 512
        $region64: #{tpu_custom_call.1} parent=51 // pred_fallthru
          _
        // Predicated region
        $region65: #{tpu_custom_call.1} parent=51 // pred_check
          %p436 = pneg %p139
        $region66: #{tpu_custom_call.1} parent=51 // pred_check_branch
          %438 = sbr.rel (%p436) target = $region68
        $region67: #{tpu_custom_call.1} parent=51 // pred_region
          %439 = dma.done [#allocation11], 16
        $region68: #{tpu_custom_call.1} parent=51 // pred_fallthru
          _
        // Predicated region
        $region69: #{tpu_custom_call.1} parent=51 // pred_check
          %p440 = pneg %p160
        $region70: #{tpu_custom_call.1} parent=51 // pred_check_branch
          %442 = sbr.rel (%p440) target = $region72
        $region71: #{tpu_custom_call.1} parent=51 // pred_region
          %443 = dma.done [#allocation11], 256
        $region72: #{tpu_custom_call.1} parent=51 // pred_fallthru
          _
        // Predicated region
        $region73: #{tpu_custom_call.1} parent=51 // pred_check
          %p444 = pneg %p181
        $region74: #{tpu_custom_call.1} parent=51 // pred_check_branch
          %446 = sbr.rel (%p444) target = $region76
        $region75: #{tpu_custom_call.1} parent=51 // pred_region
          %447 = dma.done [#allocation14], 16
        $region76: #{tpu_custom_call.1} parent=51 // pred_fallthru
          _
        // Predicated region
        $region77: #{tpu_custom_call.1} parent=51 // pred_check
          %p448 = pneg %p202
        $region78: #{tpu_custom_call.1} parent=51 // pred_check_branch
          %450 = sbr.rel (%p448) target = $region80
        $region79: #{tpu_custom_call.1} parent=51 // pred_region
          %451 = dma.done [#allocation14], 256
        $region80: #{tpu_custom_call.1} parent=51 // pred_fallthru
          _
        // Predicated region
        $region81: #{tpu_custom_call.1} parent=51 // pred_check
          %p452 = pneg %p223
        $region82: #{tpu_custom_call.1} parent=51 // pred_check_branch
          %454 = sbr.rel (%p452) target = $region84
        $region83: #{tpu_custom_call.1} parent=51 // pred_region
          %455 = dma.done [#allocation17], 16
        $region84: #{tpu_custom_call.1} parent=51 // pred_fallthru
          _
        %s456 = sand.u32 %s58, 1
        %s457 = scalar_lea.sflag [#allocation5], %s456
        %s458 = sand.u32 %s58, 1
        %s459 = smul.addr %s458, 8
        %s460 = scalar_lea.vmem [#allocation4], %s459
        %p461 = pneg %p71
        %p462 = pneg %p68
        %s463 = sand.u32 %s36, 1
        %s464 = scalar_lea.sflag [#allocation8], %s463
        %s465 = sand.u32 %s84, 1
        %s466 = smul.addr %s465, 8
        %s467 = scalar_lea.vmem [#allocation7], %s466
        %p468 = pneg %p97
        %p469 = pneg %p94
        %p470 = pneg %p118
        %p471 = pneg %p115
        %p472 = pneg %p139
        %p473 = pneg %p136
        %p474 = pneg %p160
        %p475 = pneg %p157
        %p476 = pneg %p181
        %p477 = pneg %p178
        %p478 = pneg %p202
        %p479 = pneg %p199
        %p480 = pneg %p223
        %p481 = pneg %p220
        %p482 = pneg %p251
        %p483 = pneg %p248
        %s484 = sand.u32 %s238, 1
        %s485 = scalar_lea.sflag [#allocation6], %s484
        %s486 = sand.u32 %s238, 1
        %s487 = smul.addr %s486, 8
        %s488 = scalar_lea.vmem [#allocation18], %s487
        %p489 = pneg %p279
        %p490 = pneg %p276
        %s491 = sand.u32 %s266, 1
        %s492 = scalar_lea.sflag [#allocation20], %s491
        %s493 = sand.u32 %s266, 1
        %s494 = smul.addr %s493, 8
        %s495 = scalar_lea.vmem [#allocation19], %s494
        %p496 = scmp.eq.s32.totalorder %s41, 0
        // Predicated region
        $region85: #{tpu_custom_call.1} parent=51 // pred_check
          %p497 = pneg %p496
        $region86: #{tpu_custom_call.1} parent=51 // pred_check_branch
          %499 = sbr.rel (%p497) target = $region88
        $region87: #{tpu_custom_call.1} parent=51 // pred_region
          %v500 = vld [vmem:[%s427] sm:$0xff]
          %v501 = vld [vmem:[#allocation12] sm:$0xff]
          %v502 = vld [vmem:[#allocation12 + $0x8] sm:$0xff]
          %v503 = vld [vmem:[#allocation13] sm:$0x1]
          %v505 = vlaneseq
          %v506 = vshrl.u32 %v505, 7
          %v507 = vsub.s32 0, %v506
          %v508 = vrot.slane %v503, %v507
          %vm510 = vcmask 130048
          %v512 = vsel %vm510, %v500, 0
          %514 = vmatprep.subr.mxu0 0.0
          %515 = vmatpush1.msra.mxu0 %v501
          %516 = vmatprep.subr.mxu0 0.0
          %517 = vmatpush1.msra.mxu0 %v502
          %518 = vmatprep.subr.mxu0 0.0
          %519 = vmatpush1.msra.mxu0 0.0
          %520 = vmatprep.subr.mxu0 0.0
          %521 = vmatpush1.msra.mxu0 0.0
          %522 = vmatprep.subr.mxu0 0.0
          %523 = vmatpush1.msra.mxu0 0.0
          %524 = vmatprep.subr.mxu0 0.0
          %525 = vmatpush1.msra.mxu0 0.0
          %526 = vmatprep.subr.mxu0 0.0
          %527 = vmatpush1.msra.mxu0 0.0
          %528 = vmatprep.subr.mxu0 0.0
          %529 = vmatpush1.msra.mxu0 0.0
          %530 = vmatprep.subr.mxu0 0.0
          %531 = vmatpush1.msra.mxu0 0.0
          %532 = vmatprep.subr.mxu0 0.0
          %533 = vmatpush1.msra.mxu0 0.0
          %534 = vmatprep.subr.mxu0 0.0
          %535 = vmatpush1.msra.mxu0 0.0
          %536 = vmatprep.subr.mxu0 0.0
          %537 = vmatpush1.msra.mxu0 0.0
          %538 = vmatprep.subr.mxu0 0.0
          %539 = vmatpush1.msra.mxu0 0.0
          %540 = vmatprep.subr.mxu0 0.0
          %541 = vmatpush1.msra.mxu0 0.0
          %542 = vmatprep.subr.mxu0 0.0
          %543 = vmatpush1.msra.mxu0 0.0
          %544 = vmatprep.subr.mxu0 0.0
          %545 = vmatpush1.msra.mxu0 0.0
          %546 = vmatprep.subr.mxu0 0.0
          %547 = vmatpush1.msra.mxu0 0.0
          %548 = vmatprep.subr.mxu0 0.0
          %549 = vmatpush1.msra.mxu0 0.0
          %550 = vmatprep.subr.mxu0 0.0
          %551 = vmatpush1.msra.mxu0 0.0
          %552 = vmatprep.subr.mxu0 0.0
          %553 = vmatpush1.msra.mxu0 0.0
          %554 = vmatprep.subr.mxu0 0.0
          %555 = vmatpush1.msra.mxu0 0.0
          %556 = vmatprep.subr.mxu0 0.0
          %557 = vmatpush1.msra.mxu0 0.0
          %558 = vmatprep.subr.mxu0 0.0
          %559 = vmatpush1.msra.mxu0 0.0
          %560 = vmatprep.subr.mxu0 0.0
          %561 = vmatpush1.msra.mxu0 0.0
          %562 = vmatprep.subr.mxu0 0.0
          %563 = vmatpush1.msra.mxu0 0.0
          %564 = vmatprep.subr.mxu0 0.0
          %565 = vmatpush1.msra.mxu0 0.0
          %566 = vmatprep.subr.mxu0 0.0
          %567 = vmatpush1.msra.mxu0 0.0
          %568 = vmatprep.subr.mxu0 0.0
          %569 = vmatpush1.msra.mxu0 0.0
          %570 = vmatprep.subr.mxu0 0.0
          %571 = vmatpush1.msra.mxu0 0.0
          %572 = vmatprep.subr.mxu0 0.0
          %573 = vmatpush1.msra.mxu0 0.0
          %574 = vmatprep.subr.mxu0 0.0
          %575 = vmatpush1.msra.mxu0 0.0
          %576 = vmatprep.subr.mxu0 0.0
          %577 = vmatpush1.msra.mxu0 0.0
          %578 = vmatprep.mubr.f32.mxu0 0.0
          %579 = vmatmul.mubr.f32.gmra.mrb[0].mxu0 %v512
          %v580 = vpop.f32.mrb[0].mxu0
          %v581 = vadd.f32 %v508, %v580
          %v582 = vpop.f32.mrb[0].mxu0
          %583 = vdwg.mxu0
          %v584 = vld [vmem:[#allocation15] sm:$0xff]
          %v585 = vld [vmem:[#allocation15 + $0x8] sm:$0xff]
          %v586 = vld [vmem:[#allocation16] sm:$0x1]
          %v588 = vlaneseq
          %v589 = vshrl.u32 %v588, 7
          %v590 = vsub.s32 0, %v589
          %v591 = vrot.slane %v586, %v590
          %593 = vmatprep.subr.mxu0 0.0
          %594 = vmatpush1.msra.mxu0 %v584
          %595 = vmatprep.subr.mxu0 0.0
          %596 = vmatpush1.msra.mxu0 %v585
          %597 = vmatprep.subr.mxu0 0.0
          %598 = vmatpush1.msra.mxu0 0.0
          %599 = vmatprep.subr.mxu0 0.0
          %600 = vmatpush1.msra.mxu0 0.0
          %601 = vmatprep.subr.mxu0 0.0
          %602 = vmatpush1.msra.mxu0 0.0
          %603 = vmatprep.subr.mxu0 0.0
          %604 = vmatpush1.msra.mxu0 0.0
          %605 = vmatprep.subr.mxu0 0.0
          %606 = vmatpush1.msra.mxu0 0.0
          %607 = vmatprep.subr.mxu0 0.0
          %608 = vmatpush1.msra.mxu0 0.0
          %609 = vmatprep.subr.mxu0 0.0
          %610 = vmatpush1.msra.mxu0 0.0
          %611 = vmatprep.subr.mxu0 0.0
          %612 = vmatpush1.msra.mxu0 0.0
          %613 = vmatprep.subr.mxu0 0.0
          %614 = vmatpush1.msra.mxu0 0.0
          %615 = vmatprep.subr.mxu0 0.0
          %616 = vmatpush1.msra.mxu0 0.0
          %617 = vmatprep.subr.mxu0 0.0
          %618 = vmatpush1.msra.mxu0 0.0
          %619 = vmatprep.subr.mxu0 0.0
          %620 = vmatpush1.msra.mxu0 0.0
          %621 = vmatprep.subr.mxu0 0.0
          %622 = vmatpush1.msra.mxu0 0.0
          %623 = vmatprep.subr.mxu0 0.0
          %624 = vmatpush1.msra.mxu0 0.0
          %625 = vmatprep.subr.mxu0 0.0
          %626 = vmatpush1.msra.mxu0 0.0
          %627 = vmatprep.subr.mxu0 0.0
          %628 = vmatpush1.msra.mxu0 0.0
          %629 = vmatprep.subr.mxu0 0.0
          %630 = vmatpush1.msra.mxu0 0.0
          %631 = vmatprep.subr.mxu0 0.0
          %632 = vmatpush1.msra.mxu0 0.0
          %633 = vmatprep.subr.mxu0 0.0
          %634 = vmatpush1.msra.mxu0 0.0
          %635 = vmatprep.subr.mxu0 0.0
          %636 = vmatpush1.msra.mxu0 0.0
          %637 = vmatprep.subr.mxu0 0.0
          %638 = vmatpush1.msra.mxu0 0.0
          %639 = vmatprep.subr.mxu0 0.0
          %640 = vmatpush1.msra.mxu0 0.0
          %641 = vmatprep.subr.mxu0 0.0
          %642 = vmatpush1.msra.mxu0 0.0
          %643 = vmatprep.subr.mxu0 0.0
          %644 = vmatpush1.msra.mxu0 0.0
          %645 = vmatprep.subr.mxu0 0.0
          %646 = vmatpush1.msra.mxu0 0.0
          %647 = vmatprep.subr.mxu0 0.0
          %648 = vmatpush1.msra.mxu0 0.0
          %649 = vmatprep.subr.mxu0 0.0
          %650 = vmatpush1.msra.mxu0 0.0
          %651 = vmatprep.subr.mxu0 0.0
          %652 = vmatpush1.msra.mxu0 0.0
          %653 = vmatprep.subr.mxu0 0.0
          %654 = vmatpush1.msra.mxu0 0.0
          %655 = vmatprep.subr.mxu0 0.0
          %656 = vmatpush1.msra.mxu0 0.0
          %657 = vmatprep.mubr.f32.mxu0 0.0
          %658 = vmatmul.mubr.f32.gmra.mrb[0].mxu0 %v512
          %v659 = vpop.f32.mrb[0].mxu0
          %v660 = vadd.f32 %v591, %v659
          %v661 = vpop.f32.mrb[0].mxu0
          %662 = vdwg.mxu0
          %vm663 = vcmask 261120
          %664 = vst.msk [vmem:[#allocation2] sm:$0xff] %vm663, %v581
          %665 = vst.msk [vmem:[#allocation3] sm:$0xff] %vm663, %v660
        $region88: #{tpu_custom_call.1} parent=51 // pred_fallthru
          _
        %v666 = vld [vmem:[%s418] sm:$0xff]
        %v667 = vld [vmem:[#allocation9] sm:$0xff]
        %v668 = vld [vmem:[#allocation9 + $0x8] sm:$0xff]
        %v669 = vld [vmem:[#allocation9 + $0x10] sm:$0xff]
        %v670 = vld [vmem:[#allocation9 + $0x18] sm:$0xff]
        %v671 = vld [vmem:[#allocation10] sm:$0x1]
        %v673 = vlaneseq
        %v674 = vshrl.u32 %v673, 7
        %v675 = vsub.s32 0, %v674
        %v676 = vrot.slane %v671, %v675
        %vm678 = vcmask 261120
        %v680 = vsel %vm678, %v666, 0
        %682 = vmatprep.subr.mxu0 0.0
        %683 = vmatpush1.msra.mxu0 %v667
        %684 = vmatprep.subr.mxu0 0.0
        %685 = vmatpush1.msra.mxu0 %v668
        %686 = vmatprep.subr.mxu0 0.0
        %687 = vmatpush1.msra.mxu0 %v669
        %688 = vmatprep.subr.mxu0 0.0
        %689 = vmatpush1.msra.mxu0 %v670
        %690 = vmatprep.subr.mxu0 0.0
        %691 = vmatpush1.msra.mxu0 0.0
        %692 = vmatprep.subr.mxu0 0.0
        %693 = vmatpush1.msra.mxu0 0.0
        %694 = vmatprep.subr.mxu0 0.0
        %695 = vmatpush1.msra.mxu0 0.0
        %696 = vmatprep.subr.mxu0 0.0
        %697 = vmatpush1.msra.mxu0 0.0
        %698 = vmatprep.subr.mxu0 0.0
        %699 = vmatpush1.msra.mxu0 0.0
        %700 = vmatprep.subr.mxu0 0.0
        %701 = vmatpush1.msra.mxu0 0.0
        %702 = vmatprep.subr.mxu0 0.0
        %703 = vmatpush1.msra.mxu0 0.0
        %704 = vmatprep.subr.mxu0 0.0
        %705 = vmatpush1.msra.mxu0 0.0
        %706 = vmatprep.subr.mxu0 0.0
        %707 = vmatpush1.msra.mxu0 0.0
        %708 = vmatprep.subr.mxu0 0.0
        %709 = vmatpush1.msra.mxu0 0.0
        %710 = vmatprep.subr.mxu0 0.0
        %711 = vmatpush1.msra.mxu0 0.0
        %712 = vmatprep.subr.mxu0 0.0
        %713 = vmatpush1.msra.mxu0 0.0
        %714 = vmatprep.subr.mxu0 0.0
        %715 = vmatpush1.msra.mxu0 0.0
        %716 = vmatprep.subr.mxu0 0.0
        %717 = vmatpush1.msra.mxu0 0.0
        %718 = vmatprep.subr.mxu0 0.0
        %719 = vmatpush1.msra.mxu0 0.0
        %720 = vmatprep.subr.mxu0 0.0
        %721 = vmatpush1.msra.mxu0 0.0
        %722 = vmatprep.subr.mxu0 0.0
        %723 = vmatpush1.msra.mxu0 0.0
        %724 = vmatprep.subr.mxu0 0.0
        %725 = vmatpush1.msra.mxu0 0.0
        %726 = vmatprep.subr.mxu0 0.0
        %727 = vmatpush1.msra.mxu0 0.0
        %728 = vmatprep.subr.mxu0 0.0
        %729 = vmatpush1.msra.mxu0 0.0
        %730 = vmatprep.subr.mxu0 0.0
        %731 = vmatpush1.msra.mxu0 0.0
        %732 = vmatprep.subr.mxu0 0.0
        %733 = vmatpush1.msra.mxu0 0.0
        %734 = vmatprep.subr.mxu0 0.0
        %735 = vmatpush1.msra.mxu0 0.0
        %736 = vmatprep.subr.mxu0 0.0
        %737 = vmatpush1.msra.mxu0 0.0
        %738 = vmatprep.subr.mxu0 0.0
        %739 = vmatpush1.msra.mxu0 0.0
        %740 = vmatprep.subr.mxu0 0.0
        %741 = vmatpush1.msra.mxu0 0.0
        %742 = vmatprep.subr.mxu0 0.0
        %743 = vmatpush1.msra.mxu0 0.0
        %744 = vmatprep.subr.mxu0 0.0
        %745 = vmatpush1.msra.mxu0 0.0
        %746 = vmatprep.mubr.f32.mxu0 0.0
        %747 = vmatmul.mubr.f32.gmra.mrb[0].mxu0 %v680
        %v748 = vpop.f32.mrb[0].mxu0
        %v749 = vadd.f32 %v676, %v748
        %v750 = vpop.f32.mrb[0].mxu0
        %751 = vdwg.mxu0
        %v752 = vld [vmem:[#allocation2] sm:$0xff]
        %v753 = vld [vmem:[#allocation3] sm:$0xff]
        %v755 = vsel %vm678, %v749, 0
        %v758 = vsel %vm678, %v752, 0
        %760 = vmatprep.subr.mxu0 0.0
        %761 = vmatpush1.xpose.msra.mxu0 %v758
        %762 = vmatprep.subr.mxu0 0.0
        %763 = vmatpush1.xpose.msra.mxu0 0.0
        %764 = vmatprep.subr.mxu0 0.0
        %765 = vmatpush1.xpose.msra.mxu0 0.0
        %766 = vmatprep.subr.mxu0 0.0
        %767 = vmatpush1.xpose.msra.mxu0 0.0
        %768 = vmatprep.subr.mxu0 0.0
        %769 = vmatpush1.xpose.msra.mxu0 0.0
        %770 = vmatprep.subr.mxu0 0.0
        %771 = vmatpush1.xpose.msra.mxu0 0.0
        %772 = vmatprep.subr.mxu0 0.0
        %773 = vmatpush1.xpose.msra.mxu0 0.0
        %774 = vmatprep.subr.mxu0 0.0
        %775 = vmatpush1.xpose.msra.mxu0 0.0
        %776 = vmatprep.subr.mxu0 0.0
        %777 = vmatpush1.xpose.msra.mxu0 0.0
        %778 = vmatprep.subr.mxu0 0.0
        %779 = vmatpush1.xpose.msra.mxu0 0.0
        %780 = vmatprep.subr.mxu0 0.0
        %781 = vmatpush1.xpose.msra.mxu0 0.0
        %782 = vmatprep.subr.mxu0 0.0
        %783 = vmatpush1.xpose.msra.mxu0 0.0
        %784 = vmatprep.subr.mxu0 0.0
        %785 = vmatpush1.xpose.msra.mxu0 0.0
        %786 = vmatprep.subr.mxu0 0.0
        %787 = vmatpush1.xpose.msra.mxu0 0.0
        %788 = vmatprep.subr.mxu0 0.0
        %789 = vmatpush1.xpose.msra.mxu0 0.0
        %790 = vmatprep.subr.mxu0 0.0
        %791 = vmatpush1.xpose.msra.mxu0 0.0
        %792 = vmatprep.subr.mxu0 0.0
        %793 = vmatpush1.xpose.msra.mxu0 0.0
        %794 = vmatprep.subr.mxu0 0.0
        %795 = vmatpush1.xpose.msra.mxu0 0.0
        %796 = vmatprep.subr.mxu0 0.0
        %797 = vmatpush1.xpose.msra.mxu0 0.0
        %798 = vmatprep.subr.mxu0 0.0
        %799 = vmatpush1.xpose.msra.mxu0 0.0
        %800 = vmatprep.subr.mxu0 0.0
        %801 = vmatpush1.xpose.msra.mxu0 0.0
        %802 = vmatprep.subr.mxu0 0.0
        %803 = vmatpush1.xpose.msra.mxu0 0.0
        %804 = vmatprep.subr.mxu0 0.0
        %805 = vmatpush1.xpose.msra.mxu0 0.0
        %806 = vmatprep.subr.mxu0 0.0
        %807 = vmatpush1.xpose.msra.mxu0 0.0
        %808 = vmatprep.subr.mxu0 0.0
        %809 = vmatpush1.xpose.msra.mxu0 0.0
        %810 = vmatprep.subr.mxu0 0.0
        %811 = vmatpush1.xpose.msra.mxu0 0.0
        %812 = vmatprep.subr.mxu0 0.0
        %813 = vmatpush1.xpose.msra.mxu0 0.0
        %814 = vmatprep.subr.mxu0 0.0
        %815 = vmatpush1.xpose.msra.mxu0 0.0
        %816 = vmatprep.subr.mxu0 0.0
        %817 = vmatpush1.xpose.msra.mxu0 0.0
        %818 = vmatprep.subr.mxu0 0.0
        %819 = vmatpush1.xpose.msra.mxu0 0.0
        %820 = vmatprep.subr.mxu0 0.0
        %821 = vmatpush1.xpose.msra.mxu0 0.0
        %822 = vmatprep.subr.mxu0 0.0
        %823 = vmatpush1.xpose.msra.mxu0 0.0
        %824 = vmatprep.mubr.f32.mxu0 0.0
        %825 = vmatmul.mubr.f32.gmra.mrb[0].mxu0 %v755
        %v826 = vpop.f32.mrb[0].mxu0
        %v827 = vadd.f32 0.0, %v826
        %v828 = vpop.f32.mrb[0].mxu0
        %829 = vdwg.mxu0
        %vm830 = vcmask 64512
        %v831 = vsel %vm830, %v827, -inf
        %832 = vmax.xlane.f32.xlu0 %v831
        %v833 = vpop.xlane.xlu0 %832
        %v834 = vsub.f32 %v827, %v833
        %v835 = vmul.f32 %v834, 1.442695
        %v836 = vpow.pop %v835
        %v837 = vsel %vm830, %v836, 0.0
        %838 = vadd.xlane.f32.xlu0 %v837
        %v839 = vpop.xlane.xlu0 %838
        %v840 = vrcp.pop %v839
        %v841 = vmul.f32 %v836, %v840
        %v843 = vsel %vm830, %v841, 0
        %845 = vmatprep.subr.mxu0 0.0
        %846 = vmatpush1.msra.mxu0 %v753
        %847 = vmatprep.subr.mxu0 0.0
        %848 = vmatpush1.msra.mxu0 0.0
        %849 = vmatprep.subr.mxu0 0.0
        %850 = vmatpush1.msra.mxu0 0.0
        %851 = vmatprep.subr.mxu0 0.0
        %852 = vmatpush1.msra.mxu0 0.0
        %853 = vmatprep.subr.mxu0 0.0
        %854 = vmatpush1.msra.mxu0 0.0
        %855 = vmatprep.subr.mxu0 0.0
        %856 = vmatpush1.msra.mxu0 0.0
        %857 = vmatprep.subr.mxu0 0.0
        %858 = vmatpush1.msra.mxu0 0.0
        %859 = vmatprep.subr.mxu0 0.0
        %860 = vmatpush1.msra.mxu0 0.0
        %861 = vmatprep.subr.mxu0 0.0
        %862 = vmatpush1.msra.mxu0 0.0
        %863 = vmatprep.subr.mxu0 0.0
        %864 = vmatpush1.msra.mxu0 0.0
        %865 = vmatprep.subr.mxu0 0.0
        %866 = vmatpush1.msra.mxu0 0.0
        %867 = vmatprep.subr.mxu0 0.0
        %868 = vmatpush1.msra.mxu0 0.0
        %869 = vmatprep.subr.mxu0 0.0
        %870 = vmatpush1.msra.mxu0 0.0
        %871 = vmatprep.subr.mxu0 0.0
        %872 = vmatpush1.msra.mxu0 0.0
        %873 = vmatprep.subr.mxu0 0.0
        %874 = vmatpush1.msra.mxu0 0.0
        %875 = vmatprep.subr.mxu0 0.0
        %876 = vmatpush1.msra.mxu0 0.0
        %877 = vmatprep.subr.mxu0 0.0
        %878 = vmatpush1.msra.mxu0 0.0
        %879 = vmatprep.subr.mxu0 0.0
        %880 = vmatpush1.msra.mxu0 0.0
        %881 = vmatprep.subr.mxu0 0.0
        %882 = vmatpush1.msra.mxu0 0.0
        %883 = vmatprep.subr.mxu0 0.0
        %884 = vmatpush1.msra.mxu0 0.0
        %885 = vmatprep.subr.mxu0 0.0
        %886 = vmatpush1.msra.mxu0 0.0
        %887 = vmatprep.subr.mxu0 0.0
        %888 = vmatpush1.msra.mxu0 0.0
        %889 = vmatprep.subr.mxu0 0.0
        %890 = vmatpush1.msra.mxu0 0.0
        %891 = vmatprep.subr.mxu0 0.0
        %892 = vmatpush1.msra.mxu0 0.0
        %893 = vmatprep.subr.mxu0 0.0
        %894 = vmatpush1.msra.mxu0 0.0
        %895 = vmatprep.subr.mxu0 0.0
        %896 = vmatpush1.msra.mxu0 0.0
        %897 = vmatprep.subr.mxu0 0.0
        %898 = vmatpush1.msra.mxu0 0.0
        %899 = vmatprep.subr.mxu0 0.0
        %900 = vmatpush1.msra.mxu0 0.0
        %901 = vmatprep.subr.mxu0 0.0
        %902 = vmatpush1.msra.mxu0 0.0
        %903 = vmatprep.subr.mxu0 0.0
        %904 = vmatpush1.msra.mxu0 0.0
        %905 = vmatprep.subr.mxu0 0.0
        %906 = vmatpush1.msra.mxu0 0.0
        %907 = vmatprep.subr.mxu0 0.0
        %908 = vmatpush1.msra.mxu0 0.0
        %909 = vmatprep.mubr.f32.mxu0 0.0
        %910 = vmatmul.mubr.f32.gmra.mrb[0].mxu0 %v843
        %v911 = vpop.f32.mrb[0].mxu0
        %v912 = vadd.f32 0.0, %v911
        %v913 = vpop.f32.mrb[0].mxu0
        %914 = vdwg.mxu0
        %v915 = vadd.f32 %v666, %v912
        %916 = vst.msk [vmem:[%s488] sm:$0xff] %vm678, %v915
        %917 = vst.msk [vmem:[%s495] sm:$0xff] %vm830, %v841
        %s918 = sand.u32 %s238, 1
        %s919 = scalar_lea.sflag [#allocation6], %s918
        %s920 = sand.u32 %s238, 1
        %s921 = smul.addr %s920, 8
        %s922 = scalar_lea.vmem [#allocation18], %s921
        %s923 = sand.u32 %s266, 1
        %s924 = scalar_lea.sflag [#allocation20], %s923
        %s925 = sand.u32 %s266, 1
        %s926 = smul.addr %s925, 8
        %s927 = scalar_lea.vmem [#allocation19], %s926
        // Predicated region
        $region89: #{tpu_custom_call.1} parent=51 // pred_check
          %p928 = pneg %p248
        $region90: #{tpu_custom_call.1} parent=51 // pred_check_branch
          %930 = sbr.rel (%p928) target = $region92
        $region91: #{tpu_custom_call.1} parent=51 // pred_region
          %s932 = ssub.s32 128, 128
          %933 = vsyncadd %s919, %s932
          %s934 = sadd.s32 %s41, %s40
          %s935 = smul.addr %s934, 128
          %s936 = scalar_lea.hbm %s8, %s935
          %s938 = sshll.u32 %s922, 4
          %s939 = int_to_ptr.vmem [resolvable:$true] %s938
          %941 = dma.vmem_to_hbm [thread:$0]  %s939, 128, %s936, %s919
        $region92: #{tpu_custom_call.1} parent=51 // pred_fallthru
          _
        // Predicated region
        $region93: #{tpu_custom_call.1} parent=51 // pred_check
          %p942 = pneg %p276
        $region94: #{tpu_custom_call.1} parent=51 // pred_check_branch
          %944 = sbr.rel (%p942) target = $region96
        $region95: #{tpu_custom_call.1} parent=51 // pred_region
          %s946 = ssub.s32 128, 128
          %947 = vsyncadd %s924, %s946
          %s948 = sadd.s32 %s41, %s40
          %s949 = smul.addr %s948, 128
          %s950 = scalar_lea.hbm %s9, %s949
          %s952 = sshll.u32 %s927, 4
          %s953 = int_to_ptr.vmem [resolvable:$true] %s952
          %955 = dma.vmem_to_hbm [thread:$0]  %s953, 128, %s950, %s924
        $region96: #{tpu_custom_call.1} parent=51 // pred_fallthru
          _
      $region52: #{tpu_custom_call.1} parent=5 // pred_fallthru
        _
      %p956 = scmp.le.s32.totalorder 2, %s31
      // Predicated region
      $region97: #{tpu_custom_call.1} parent=5 // pred_check
        %p957 = pneg %p956
      $region98: #{tpu_custom_call.1} parent=5 // pred_check_branch
        %959 = sbr.rel (%p957) target = $region100
      $region99: #{tpu_custom_call.1} parent=5 // pred_region
        %s960 = ssub.s32 %s31, 2
        // Predicated region
        $region101: #{tpu_custom_call.1} parent=99 // pred_check
          %p961 = pneg %p254
        $region102: #{tpu_custom_call.1} parent=99 // pred_check_branch
          %963 = sbr.rel (%p961) target = $region104
        $region103: #{tpu_custom_call.1} parent=99 // pred_region
          %s964 = sand.u32 %s239, 1
          %s965 = scalar_lea.sflag [#allocation6], %s964
          %s966 = sand.u32 %s239, 1
          %s967 = smul.addr %s966, 8
          %s968 = scalar_lea.vmem [#allocation18], %s967
          %969 = dma.done %s965, 128
        $region104: #{tpu_custom_call.1} parent=99 // pred_fallthru
          _
        // Predicated region
        $region105: #{tpu_custom_call.1} parent=99 // pred_check
          %p970 = pneg %p282
        $region106: #{tpu_custom_call.1} parent=99 // pred_check_branch
          %972 = sbr.rel (%p970) target = $region108
        $region107: #{tpu_custom_call.1} parent=99 // pred_region
          %s973 = sand.u32 %s267, 1
          %s974 = scalar_lea.sflag [#allocation20], %s973
          %s975 = sand.u32 %s267, 1
          %s976 = smul.addr %s975, 8
          %s977 = scalar_lea.vmem [#allocation19], %s976
          %978 = dma.done %s974, 128
        $region108: #{tpu_custom_call.1} parent=99 // pred_fallthru
          _
      $region100: #{tpu_custom_call.1} parent=5 // pred_fallthru
        _
    $region6: #{tpu_custom_call.1} parent=1 // loop_footer
      %s35 = sadd.s32 1, %s31
    $region7: #{tpu_custom_call.1} parent=1 // loop_footer_branch
      %30 = sbr.rel target = $region3
    $region8: #{tpu_custom_call.1} parent=1 // loop_exit
      _
    %979 = vsyncpa [#allocation5], 1
    %s980 = scalar_lea.sflag [#allocation5], 1
    %981 = vsyncpa %s980, 1
    %982 = vsyncpa [#allocation8], 1
    %s983 = scalar_lea.sflag [#allocation8], 1
    %984 = vsyncpa %s983, 1
    %985 = vsyncpa [#allocation11], 1
    %986 = vsyncpa [#allocation14], 1
    %987 = vsyncpa [#allocation17], 1
    %988 = vsyncpa [#allocation6], 1
    %s989 = scalar_lea.sflag [#allocation6], 1
    %990 = vsyncpa %s989, 1
    %991 = vsyncpa [#allocation20], 1
    %s992 = scalar_lea.sflag [#allocation20], 1
    %993 = vsyncpa %s992, 1

// kernel: tpu_custom_call.1
$region0: #{tpu_custom_call.1}
  #allocation0 [shape = 'u32[]', space=smem, size = 0x4, offset = 0x4, fixed_abs, tag = 'smem constant byte address 0x4 - core index']
  #allocation1 [shape = 'u32[144,128]{1,0:T(1,128)}', space=vmem, size = 0x12000, scoped, tag = 'internal scratch']
  #allocation2 [shape = 'f32[1,8,32]{2,1,0:T(8,128)}', space=vmem, size = 0x1000, scoped, tag = 'scratch operand']
  #allocation3 [shape = 'f32[1,8,32]{2,1,0:T(8,128)}', space=vmem, size = 0x1000, scoped, tag = 'scratch operand']
  %s0 = inlined_call_operand.hbm [shape: f32[2,8,32], index: 0, kind: input, shape index: {}]
  %s1 = inlined_call_operand.hbm [shape: f32[2,8,16], index: 1, kind: input, shape index: {}]
  %s2 = inlined_call_operand.hbm [shape: f32[32,32], index: 2, kind: input, shape index: {}]
  %s3 = inlined_call_operand.hbm [shape: f32[1,32], index: 3, kind: input, shape index: {}]
  %s4 = inlined_call_operand.hbm [shape: f32[16,32], index: 4, kind: input, shape index: {}]
  %s5 = inlined_call_operand.hbm [shape: f32[1,32], index: 5, kind: input, shape index: {}]
  %s6 = inlined_call_operand.hbm [shape: f32[16,32], index: 6, kind: input, shape index: {}]
  %s7 = inlined_call_operand.hbm [shape: f32[1,32], index: 7, kind: input, shape index: {}]
  %s8 = inlined_call_operand.hbm [shape: f32[2,8,32], index: 8, kind: output, shape index: {0}]
  %s9 = inlined_call_operand.hbm [shape: f32[2,8,8], index: 9, kind: output, shape index: {1}]
  %10 = xla_tuple %s8, %s9
  %s11 = sld [smem:[#allocation0]]
  $region109: #{tpu_custom_call.1} parent=0
    _
  %s13 = ssub.s32 1, %s11
  %s14 = scalar_select 0, %s13, %s11
  $region1: #{tpu_custom_call.1} parent=0
    #allocation4 [shape = 'u8[8192]{0}', space=vmem, size = 0x2000, scoped, tag = 'input window, operand 0']
    #allocation5 [shape = 's32[2]{0}', space=sflag, size = 0x8, scoped, tag = 'scoped memory for tpu_custom_call.1']
    #allocation6 [shape = 's32[2]{0}', space=sflag, size = 0x8, scoped, tag = 'scoped memory for tpu_custom_call.1']
    #allocation7 [shape = 'u8[8192]{0}', space=vmem, size = 0x2000, scoped, tag = 'input window, operand 1']
    #allocation8 [shape = 's32[2]{0}', space=sflag, size = 0x8, scoped, tag = 'scoped memory for tpu_custom_call.1']
    #allocation9 [shape = 'u8[16384]{0}', space=vmem, size = 0x4000, scoped, tag = 'input window, operand 2, single buffered']
    #allocation10 [shape = 'u8[512]{0}', space=vmem, size = 0x400, scoped, tag = 'input window, operand 3, single buffered']
    #allocation11 [shape = 's32[1]{0}', space=sflag, size = 0x4, scoped, tag = 'scoped memory for tpu_custom_call.1']
    #allocation12 [shape = 'u8[8192]{0}', space=vmem, size = 0x2000, scoped, tag = 'input window, operand 4, single buffered']
    #allocation13 [shape = 'u8[512]{0}', space=vmem, size = 0x400, scoped, tag = 'input window, operand 5, single buffered']
    #allocation14 [shape = 's32[1]{0}', space=sflag, size = 0x4, scoped, tag = 'scoped memory for tpu_custom_call.1']
    #allocation15 [shape = 'u8[8192]{0}', space=vmem, size = 0x2000, scoped, tag = 'input window, operand 6, single buffered']
    #allocation16 [shape = 'u8[512]{0}', space=vmem, size = 0x400, scoped, tag = 'input window, operand 7, single buffered']
    #allocation17 [shape = 's32[1]{0}', space=sflag, size = 0x4, scoped, tag = 'scoped memory for tpu_custom_call.1']
    #allocation18 [shape = 'u8[8192]{0}', space=vmem, size = 0x2000, scoped, tag = 'output window, operand 0']
    #allocation19 [shape = 'u8[8192]{0}', space=vmem, size = 0x2000, scoped, tag = 'output window, operand 1']
    #allocation20 [shape = 's32[2]{0}', space=sflag, size = 0x8, scoped, tag = 'scoped memory for tpu_custom_call.1']
    %15 = vsyncpa [#allocation5], 0
    %s16 = scalar_lea.sflag [#allocation5], 1
    %17 = vsyncpa %s16, 0
    %18 = vsyncpa [#allocation8], 0
    %s19 = scalar_lea.sflag [#allocation8], 1
    %20 = vsyncpa %s19, 0
    %21 = vsyncpa [#allocation11], 0
    %22 = vsyncpa [#allocation14], 0
    %23 = vsyncpa [#allocation17], 0
    %24 = vsyncpa [#allocation6], 0
    %s25 = scalar_lea.sflag [#allocation6], 1
    %26 = vsyncpa %s25, 0
    %27 = vsyncpa [#allocation20], 0
    %s28 = scalar_lea.sflag [#allocation20], 1
    %29 = vsyncpa %s28, 0
    loop: start=0, step=1, limit=4
    $region2: #{tpu_custom_call.1} parent=1 // loop_pre_header
      _
    $region3: #{tpu_custom_call.1} parent=1 // loop_header
      %s31 = sphi 0, %s35
      %p32 = scmp.ge.s32.totalorder %s31, 4
      %s38 = sphi 0, %s50
      %s39 = sphi 0, %s46
      %s40 = sphi 0, %s38
      %s41 = sphi 0, %s39
      %s42 = sphi 0, %s40
      %s43 = sphi 0, %s41
      %s55 = sphi 0, %s57
      %s58 = sphi 0, %s55
      %s59 = sphi 0, %s58
      %s75 = sphi 0, %s59
      %s81 = sphi 0, %s83
      %s84 = sphi 0, %s81
      %s85 = sphi 0, %s84
      %s101 = sphi 0, %s85
      %s105 = sphi 0, %s105
      %s107 = sphi 0, %s105
      %s108 = sphi 0, %s107
      %s122 = sphi 0, %s108
      %s126 = sphi 0, %s126
      %s128 = sphi 0, %s126
      %s129 = sphi 0, %s128
      %s143 = sphi 0, %s129
      %s147 = sphi 0, %s147
      %s149 = sphi 0, %s147
      %s150 = sphi 0, %s149
      %s164 = sphi 0, %s150
      %s168 = sphi 0, %s168
      %s170 = sphi 0, %s168
      %s171 = sphi 0, %s170
      %s185 = sphi 0, %s171
      %s189 = sphi 0, %s189
      %s191 = sphi 0, %s189
      %s192 = sphi 0, %s191
      %s206 = sphi 0, %s192
      %s210 = sphi 0, %s210
      %s212 = sphi 0, %s210
      %s213 = sphi 0, %s212
      %s227 = sphi 0, %s213
      %s235 = sphi 0, %s237
      %s238 = sphi 0, %s235
      %s239 = sphi 0, %s238
      %s255 = sphi 0, %s239
      %s263 = sphi 0, %s265
      %s266 = sphi 0, %s263
      %s267 = sphi 0, %s266
      %s283 = sphi 0, %s267
    $region4: #{tpu_custom_call.1} parent=1 // loop_header_branch
      %34 = sbr.rel (%p32) target = $region8
    $region5: #{tpu_custom_call.1} parent=1 // loop_body
      %s36 = ssub.s32 %s31, 1
      %s37 = ssub.s32 %s31, 2
      %s44 = sadd.s32 1, %s39
      %p45 = scmp.ge.s32.totalorder %s44, 1
      %s46 = scalar_select %p45, 0, %s44
      %s47 = sadd.s32 1, %s38
      %s48 = scalar_select %p45, %s47, %s38
      %p49 = scmp.ge.s32.totalorder %s48, 2
      %s50 = scalar_select %p49, 0, %s48
      %s51 = ssub.s32 %s38, %s50
      %s52 = ssub.s32 %s39, %s46
      %s53 = sor.u32 %s51, %s52
      %p54 = scmp.eq.s32.totalorder %s53, 0
      %s56 = sadd.s32 %s55, 1
      %s57 = scalar_select %p54, %s55, %s56
      %p60 = pneg %p54
      %p61 = scmp.eq.s32.totalorder %s31, 1
      %p62 = por %p60, %p61
      %p63 = scmp.ne.s32.totalorder %s55, %s58
      %p64 = scmp.eq.s32.totalorder %s31, 0
      %p65 = por %p63, %p64
      %p66 = scmp.ne.s32.totalorder %s55, %s58
      %p67 = scmp.eq.s32.totalorder %s36, 1
      %p68 = por %p66, %p67
      %p69 = scmp.ne.s32.totalorder %s58, %s59
      %p70 = scmp.eq.s32.totalorder %s36, 0
      %p71 = por %p69, %p70
      %p72 = scmp.ne.s32.totalorder %s58, %s59
      %p73 = scmp.eq.s32.totalorder %s37, 1
      %p74 = por %p72, %p73
      %p76 = scmp.ne.s32.totalorder %s59, %s75
      %p77 = scmp.eq.s32.totalorder %s37, 0
      %p78 = por %p76, %p77
      %s79 = ssub.s32 %s38, %s50
      %p80 = scmp.eq.s32.totalorder %s79, 0
      %s82 = sadd.s32 %s81, 1
      %s83 = scalar_select %p80, %s81, %s82
      %p86 = pneg %p80
      %p87 = scmp.eq.s32.totalorder %s31, 1
      %p88 = por %p86, %p87
      %p89 = scmp.ne.s32.totalorder %s81, %s84
      %p90 = scmp.eq.s32.totalorder %s31, 0
      %p91 = por %p89, %p90
      %p92 = scmp.ne.s32.totalorder %s81, %s84
      %p93 = scmp.eq.s32.totalorder %s36, 1
      %p94 = por %p92, %p93
      %p95 = scmp.ne.s32.totalorder %s84, %s85
      %p96 = scmp.eq.s32.totalorder %s36, 0
      %p97 = por %p95, %p96
      %p98 = scmp.ne.s32.totalorder %s84, %s85
      %p99 = scmp.eq.s32.totalorder %s37, 1
      %p100 = por %p98, %p99
      %p102 = scmp.ne.s32.totalorder %s85, %s101
      %p103 = scmp.eq.s32.totalorder %s37, 0
      %p104 = por %p102, %p103
      %s106 = sadd.s32 %s105, 1
      %p109 = scmp.eq.s32.totalorder %s31, 1
      %p110 = scmp.ne.s32.totalorder %s105, %s107
      %p111 = scmp.eq.s32.totalorder %s31, 0
      %p112 = por %p110, %p111
      %p113 = scmp.ne.s32.totalorder %s105, %s107
      %p114 = scmp.eq.s32.totalorder %s36, 1
      %p115 = por %p113, %p114
      %p116 = scmp.ne.s32.totalorder %s107, %s108
      %p117 = scmp.eq.s32.totalorder %s36, 0
      %p118 = por %p116, %p117
      %p119 = scmp.ne.s32.totalorder %s107, %s108
      %p120 = scmp.eq.s32.totalorder %s37, 1
      %p121 = por %p119, %p120
      %p123 = scmp.ne.s32.totalorder %s108, %s122
      %p124 = scmp.eq.s32.totalorder %s37, 0
      %p125 = por %p123, %p124
      %s127 = sadd.s32 %s126, 1
      %p130 = scmp.eq.s32.totalorder %s31, 1
      %p131 = scmp.ne.s32.totalorder %s126, %s128
      %p132 = scmp.eq.s32.totalorder %s31, 0
      %p133 = por %p131, %p132
      %p134 = scmp.ne.s32.totalorder %s126, %s128
      %p135 = scmp.eq.s32.totalorder %s36, 1
      %p136 = por %p134, %p135
      %p137 = scmp.ne.s32.totalorder %s128, %s129
      %p138 = scmp.eq.s32.totalorder %s36, 0
      %p139 = por %p137, %p138
      %p140 = scmp.ne.s32.totalorder %s128, %s129
      %p141 = scmp.eq.s32.totalorder %s37, 1
      %p142 = por %p140, %p141
      %p144 = scmp.ne.s32.totalorder %s129, %s143
      %p145 = scmp.eq.s32.totalorder %s37, 0
      %p146 = por %p144, %p145
      %s148 = sadd.s32 %s147, 1
      %p151 = scmp.eq.s32.totalorder %s31, 1
      %p152 = scmp.ne.s32.totalorder %s147, %s149
      %p153 = scmp.eq.s32.totalorder %s31, 0
      %p154 = por %p152, %p153
      %p155 = scmp.ne.s32.totalorder %s147, %s149
      %p156 = scmp.eq.s32.totalorder %s36, 1
      %p157 = por %p155, %p156
      %p158 = scmp.ne.s32.totalorder %s149, %s150
      %p159 = scmp.eq.s32.totalorder %s36, 0
      %p160 = por %p158, %p159
      %p161 = scmp.ne.s32.totalorder %s149, %s150
      %p162 = scmp.eq.s32.totalorder %s37, 1
      %p163 = por %p161, %p162
      %p165 = scmp.ne.s32.totalorder %s150, %s164
      %p166 = scmp.eq.s32.totalorder %s37, 0
      %p167 = por %p165, %p166
      %s169 = sadd.s32 %s168, 1
      %p172 = scmp.eq.s32.totalorder %s31, 1
      %p173 = scmp.ne.s32.totalorder %s168, %s170
      %p174 = scmp.eq.s32.totalorder %s31, 0
      %p175 = por %p173, %p174
      %p176 = scmp.ne.s32.totalorder %s168, %s170
      %p177 = scmp.eq.s32.totalorder %s36, 1
      %p178 = por %p176, %p177
      %p179 = scmp.ne.s32.totalorder %s170, %s171
      %p180 = scmp.eq.s32.totalorder %s36, 0
      %p181 = por %p179, %p180
      %p182 = scmp.ne.s32.totalorder %s170, %s171
      %p183 = scmp.eq.s32.totalorder %s37, 1
      %p184 = por %p182, %p183
      %p186 = scmp.ne.s32.totalorder %s171, %s185
      %p187 = scmp.eq.s32.totalorder %s37, 0
      %p188 = por %p186, %p187
      %s190 = sadd.s32 %s189, 1
      %p193 = scmp.eq.s32.totalorder %s31, 1
      %p194 = scmp.ne.s32.totalorder %s189, %s191
      %p195 = scmp.eq.s32.totalorder %s31, 0
      %p196 = por %p194, %p195
      %p197 = scmp.ne.s32.totalorder %s189, %s191
      %p198 = scmp.eq.s32.totalorder %s36, 1
      %p199 = por %p197, %p198
      %p200 = scmp.ne.s32.totalorder %s191, %s192
      %p201 = scmp.eq.s32.totalorder %s36, 0
      %p202 = por %p200, %p201
      %p203 = scmp.ne.s32.totalorder %s191, %s192
      %p204 = scmp.eq.s32.totalorder %s37, 1
      %p205 = por %p203, %p204
      %p207 = scmp.ne.s32.totalorder %s192, %s206
      %p208 = scmp.eq.s32.totalorder %s37, 0
      %p209 = por %p207, %p208
      %s211 = sadd.s32 %s210, 1
      %p214 = scmp.eq.s32.totalorder %s31, 1
      %p215 = scmp.ne.s32.totalorder %s210, %s212
      %p216 = scmp.eq.s32.totalorder %s31, 0
      %p217 = por %p215, %p216
      %p218 = scmp.ne.s32.totalorder %s210, %s212
      %p219 = scmp.eq.s32.totalorder %s36, 1
      %p220 = por %p218, %p219
      %p221 = scmp.ne.s32.totalorder %s212, %s213
      %p222 = scmp.eq.s32.totalorder %s36, 0
      %p223 = por %p221, %p222
      %p224 = scmp.ne.s32.totalorder %s212, %s213
      %p225 = scmp.eq.s32.totalorder %s37, 1
      %p226 = por %p224, %p225
      %p228 = scmp.ne.s32.totalorder %s213, %s227
      %p229 = scmp.eq.s32.totalorder %s37, 0
      %p230 = por %p228, %p229
      %s231 = ssub.s32 %s38, %s50
      %s232 = ssub.s32 %s39, %s46
      %s233 = sor.u32 %s231, %s232
      %p234 = scmp.eq.s32.totalorder %s233, 0
      %s236 = sadd.s32 %s235, 1
      %s237 = scalar_select %p234, %s235, %s236
      %p240 = pneg %p234
      %p241 = scmp.eq.s32.totalorder %s31, 1
      %p242 = por %p240, %p241
      %p243 = scmp.ne.s32.totalorder %s235, %s238
      %p244 = scmp.eq.s32.totalorder %s31, 0
      %p245 = por %p243, %p244
      %p246 = scmp.ne.s32.totalorder %s235, %s238
      %p247 = scmp.eq.s32.totalorder %s36, 1
      %p248 = por %p246, %p247
      %p249 = scmp.ne.s32.totalorder %s238, %s239
      %p250 = scmp.eq.s32.totalorder %s36, 0
      %p251 = por %p249, %p250
      %p252 = scmp.ne.s32.totalorder %s238, %s239
      %p253 = scmp.eq.s32.totalorder %s37, 1
      %p254 = por %p252, %p253
      %p256 = scmp.ne.s32.totalorder %s239, %s255
      %p257 = scmp.eq.s32.totalorder %s37, 0
      %p258 = por %p256, %p257
      %s259 = ssub.s32 %s38, %s50
      %s260 = ssub.s32 %s39, %s46
      %s261 = sor.u32 %s259, %s260
      %p262 = scmp.eq.s32.totalorder %s261, 0
      %s264 = sadd.s32 %s263, 1
      %s265 = scalar_select %p262, %s263, %s264
      %p268 = pneg %p262
      %p269 = scmp.eq.s32.totalorder %s31, 1
      %p270 = por %p268, %p269
      %p271 = scmp.ne.s32.totalorder %s263, %s266
      %p272 = scmp.eq.s32.totalorder %s31, 0
      %p273 = por %p271, %p272
      %p274 = scmp.ne.s32.totalorder %s263, %s266
      %p275 = scmp.eq.s32.totalorder %s36, 1
      %p276 = por %p274, %p275
      %p277 = scmp.ne.s32.totalorder %s266, %s267
      %p278 = scmp.eq.s32.totalorder %s36, 0
      %p279 = por %p277, %p278
      %p280 = scmp.ne.s32.totalorder %s266, %s267
      %p281 = scmp.eq.s32.totalorder %s37, 1
      %p282 = por %p280, %p281
      %p284 = scmp.ne.s32.totalorder %s267, %s283
      %p285 = scmp.eq.s32.totalorder %s37, 0
      %p286 = por %p284, %p285
      %p287 = scmp.le.s32.totalorder 1, %s31
      %p288 = scmp.lt.s32.totalorder %s31, 3
      %p289 = pnand %p287, %p288
      %p290 = pneg %p289
      // Predicated region
      $region9: #{tpu_custom_call.1} parent=5 // pred_check
        _
      $region10: #{tpu_custom_call.1} parent=5 // pred_check_branch
        %292 = sbr.rel (%p289) target = $region12
      $region11: #{tpu_custom_call.1} parent=5 // pred_region
        %s293 = ssub.s32 %s31, 1
        // Predicated region
        $region13: #{tpu_custom_call.1} parent=11 // pred_check
          %p294 = pneg %p118
        $region14: #{tpu_custom_call.1} parent=11 // pred_check_branch
          %296 = sbr.rel (%p294) target = $region16
        $region15: #{tpu_custom_call.1} parent=11 // pred_region
          %s298 = ssub.s32 512, 512
          %299 = vsyncadd [#allocation8], %s298
          %s300 = sshll.u32 [#allocation9], 4
          %s301 = int_to_ptr.vmem [resolvable:$true] %s300
          %306 = dma.hbm_to_vmem [thread:$0]  %s2, 512, %s301, [#allocation8], 128, 128, 8
        $region16: #{tpu_custom_call.1} parent=11 // pred_fallthru
          _
        // Predicated region
        $region17: #{tpu_custom_call.1} parent=11 // pred_check
          %p307 = pneg %p139
        $region18: #{tpu_custom_call.1} parent=11 // pred_check_branch
          %309 = sbr.rel (%p307) target = $region20
        $region19: #{tpu_custom_call.1} parent=11 // pred_region
          %s311 = ssub.s32 16, 16
          %312 = vsyncadd [#allocation11], %s311
          %s314 = sshll.u32 [#allocation10], 4
          %s315 = int_to_ptr.vmem [resolvable:$true] %s314
          %317 = dma.hbm_to_vmem [thread:$0]  %s3, 16, %s315, [#allocation11]
        $region20: #{tpu_custom_call.1} parent=11 // pred_fallthru
          _
        // Predicated region
        $region21: #{tpu_custom_call.1} parent=11 // pred_check
          %p318 = pneg %p160
        $region22: #{tpu_custom_call.1} parent=11 // pred_check_branch
          %320 = sbr.rel (%p318) target = $region24
        $region23: #{tpu_custom_call.1} parent=11 // pred_region
          %s322 = ssub.s32 256, 256
          %323 = vsyncadd [#allocation11], %s322
          %s324 = sshll.u32 [#allocation12], 4
          %s325 = int_to_ptr.vmem [resolvable:$true] %s324
          %330 = dma.hbm_to_vmem [thread:$0]  %s4, 256, %s325, [#allocation11], 128, 128, 8
        $region24: #{tpu_custom_call.1} parent=11 // pred_fallthru
          _
        // Predicated region
        $region25: #{tpu_custom_call.1} parent=11 // pred_check
          %p331 = pneg %p181
        $region26: #{tpu_custom_call.1} parent=11 // pred_check_branch
          %333 = sbr.rel (%p331) target = $region28
        $region27: #{tpu_custom_call.1} parent=11 // pred_region
          %s335 = ssub.s32 16, 16
          %336 = vsyncadd [#allocation14], %s335
          %s338 = sshll.u32 [#allocation13], 4
          %s339 = int_to_ptr.vmem [resolvable:$true] %s338
          %341 = dma.hbm_to_vmem [thread:$0]  %s5, 16, %s339, [#allocation14]
        $region28: #{tpu_custom_call.1} parent=11 // pred_fallthru
          _
        // Predicated region
        $region29: #{tpu_custom_call.1} parent=11 // pred_check
          %p342 = pneg %p202
        $region30: #{tpu_custom_call.1} parent=11 // pred_check_branch
          %344 = sbr.rel (%p342) target = $region32
        $region31: #{tpu_custom_call.1} parent=11 // pred_region
          %s346 = ssub.s32 256, 256
          %347 = vsyncadd [#allocation14], %s346
          %s348 = sshll.u32 [#allocation15], 4
          %s349 = int_to_ptr.vmem [resolvable:$true] %s348
          %354 = dma.hbm_to_vmem [thread:$0]  %s6, 256, %s349, [#allocation14], 128, 128, 8
        $region32: #{tpu_custom_call.1} parent=11 // pred_fallthru
          _
        // Predicated region
        $region33: #{tpu_custom_call.1} parent=11 // pred_check
          %p355 = pneg %p223
        $region34: #{tpu_custom_call.1} parent=11 // pred_check_branch
          %357 = sbr.rel (%p355) target = $region36
        $region35: #{tpu_custom_call.1} parent=11 // pred_region
          %s359 = ssub.s32 16, 16
          %360 = vsyncadd [#allocation17], %s359
          %s362 = sshll.u32 [#allocation16], 4
          %s363 = int_to_ptr.vmem [resolvable:$true] %s362
          %365 = dma.hbm_to_vmem [thread:$0]  %s7, 16, %s363, [#allocation17]
        $region36: #{tpu_custom_call.1} parent=11 // pred_fallthru
          _
      $region12: #{tpu_custom_call.1} parent=5 // pred_fallthru
        _
      %p366 = scmp.lt.s32.totalorder %s31, 2
      // Predicated region
      $region37: #{tpu_custom_call.1} parent=5 // pred_check
        %p367 = pneg %p366
      $region38: #{tpu_custom_call.1} parent=5 // pred_check_branch
        %369 = sbr.rel (%p367) target = $region40
      $region39: #{tpu_custom_call.1} parent=5 // pred_region
        // Predicated region
        $region41: #{tpu_custom_call.1} parent=39 // pred_check
          %p370 = pneg %p65
        $region42: #{tpu_custom_call.1} parent=39 // pred_check_branch
          %372 = sbr.rel (%p370) target = $region44
        $region43: #{tpu_custom_call.1} parent=39 // pred_region
          %s373 = sand.u32 %s55, 1
          %s374 = scalar_lea.sflag [#allocation5], %s373
          %s375 = sand.u32 %s55, 1
          %s376 = smul.addr %s375, 8
          %s377 = scalar_lea.vmem [#allocation4], %s376
          %s379 = ssub.s32 128, 128
          %380 = vsyncadd %s374, %s379
          %s381 = sadd.s32 %s39, %s38
          %s382 = smul.addr %s381, 128
          %s383 = scalar_lea.hbm %s0, %s382
          %s385 = sshll.u32 %s377, 4
          %s386 = int_to_ptr.vmem [resolvable:$true] %s385
          %388 = dma.hbm_to_vmem [thread:$0]  %s383, 128, %s386, %s374
        $region44: #{tpu_custom_call.1} parent=39 // pred_fallthru
          _
        // Predicated region
        $region45: #{tpu_custom_call.1} parent=39 // pred_check
          %p389 = pneg %p91
        $region46: #{tpu_custom_call.1} parent=39 // pred_check_branch
          %391 = sbr.rel (%p389) target = $region48
        $region47: #{tpu_custom_call.1} parent=39 // pred_region
          %s392 = sand.u32 %s31, 1
          %s393 = scalar_lea.sflag [#allocation8], %s392
          %s394 = sand.u32 %s81, 1
          %s395 = smul.addr %s394, 8
          %s396 = scalar_lea.vmem [#allocation7], %s395
          %s398 = ssub.s32 128, 128
          %399 = vsyncadd %s393, %s398
          %s400 = smul.addr %s38, 128
          %s401 = scalar_lea.hbm %s1, %s400
          %s403 = sshll.u32 %s396, 4
          %s404 = int_to_ptr.vmem [resolvable:$true] %s403
          %406 = dma.hbm_to_vmem [thread:$0]  %s401, 128, %s404, %s393
        $region48: #{tpu_custom_call.1} parent=39 // pred_fallthru
          _
      $region40: #{tpu_custom_call.1} parent=5 // pred_fallthru
        _
      %p407 = scmp.le.s32.totalorder 1, %s31
      %p408 = scmp.lt.s32.totalorder %s31, 3
      %p409 = pnand %p407, %p408
      %p410 = pneg %p409
      // Predicated region
      $region49: #{tpu_custom_call.1} parent=5 // pred_check
        _
      $region50: #{tpu_custom_call.1} parent=5 // pred_check_branch
        %412 = sbr.rel (%p409) target = $region52
      $region51: #{tpu_custom_call.1} parent=5 // pred_region
        %s413 = ssub.s32 %s31, 1
        %s414 = sand.u32 %s58, 1
        %s415 = scalar_lea.sflag [#allocation5], %s414
        %s416 = sand.u32 %s58, 1
        %s417 = smul.addr %s416, 8
        %s418 = scalar_lea.vmem [#allocation4], %s417
        // Predicated region
        $region53: #{tpu_custom_call.1} parent=51 // pred_check
          %p419 = pneg %p71
        $region54: #{tpu_custom_call.1} parent=51 // pred_check_branch
          %421 = sbr.rel (%p419) target = $region56
        $region55: #{tpu_custom_call.1} parent=51 // pred_region
          %422 = dma.done %s415, 128
        $region56: #{tpu_custom_call.1} parent=51 // pred_fallthru
          _
        %s423 = sand.u32 %s36, 1
        %s424 = scalar_lea.sflag [#allocation8], %s423
        %s425 = sand.u32 %s84, 1
        %s426 = smul.addr %s425, 8
        %s427 = scalar_lea.vmem [#allocation7], %s426
        // Predicated region
        $region57: #{tpu_custom_call.1} parent=51 // pred_check
          %p428 = pneg %p97
        $region58: #{tpu_custom_call.1} parent=51 // pred_check_branch
          %430 = sbr.rel (%p428) target = $region60
        $region59: #{tpu_custom_call.1} parent=51 // pred_region
          %431 = dma.done %s424, 128
        $region60: #{tpu_custom_call.1} parent=51 // pred_fallthru
          _
        // Predicated region
        $region61: #{tpu_custom_call.1} parent=51 // pred_check
          %p432 = pneg %p118
        $region62: #{tpu_custom_call.1} parent=51 // pred_check_branch
          %434 = sbr.rel (%p432) target = $region64
        $region63: #{tpu_custom_call.1} parent=51 // pred_region
          %435 = dma.done [#allocation8], 512
        $region64: #{tpu_custom_call.1} parent=51 // pred_fallthru
          _
        // Predicated region
        $region65: #{tpu_custom_call.1} parent=51 // pred_check
          %p436 = pneg %p139
        $region66: #{tpu_custom_call.1} parent=51 // pred_check_branch
          %438 = sbr.rel (%p436) target = $region68
        $region67: #{tpu_custom_call.1} parent=51 // pred_region
          %439 = dma.done [#allocation11], 16
        $region68: #{tpu_custom_call.1} parent=51 // pred_fallthru
          _
        // Predicated region
        $region69: #{tpu_custom_call.1} parent=51 // pred_check
          %p440 = pneg %p160
        $region70: #{tpu_custom_call.1} parent=51 // pred_check_branch
          %442 = sbr.rel (%p440) target = $region72
        $region71: #{tpu_custom_call.1} parent=51 // pred_region
          %443 = dma.done [#allocation11], 256
        $region72: #{tpu_custom_call.1} parent=51 // pred_fallthru
          _
        // Predicated region
        $region73: #{tpu_custom_call.1} parent=51 // pred_check
          %p444 = pneg %p181
        $region74: #{tpu_custom_call.1} parent=51 // pred_check_branch
          %446 = sbr.rel (%p444) target = $region76
        $region75: #{tpu_custom_call.1} parent=51 // pred_region
          %447 = dma.done [#allocation14], 16
        $region76: #{tpu_custom_call.1} parent=51 // pred_fallthru
          _
        // Predicated region
        $region77: #{tpu_custom_call.1} parent=51 // pred_check
          %p448 = pneg %p202
        $region78: #{tpu_custom_call.1} parent=51 // pred_check_branch
          %450 = sbr.rel (%p448) target = $region80
        $region79: #{tpu_custom_call.1} parent=51 // pred_region
          %451 = dma.done [#allocation14], 256
        $region80: #{tpu_custom_call.1} parent=51 // pred_fallthru
          _
        // Predicated region
        $region81: #{tpu_custom_call.1} parent=51 // pred_check
          %p452 = pneg %p223
        $region82: #{tpu_custom_call.1} parent=51 // pred_check_branch
          %454 = sbr.rel (%p452) target = $region84
        $region83: #{tpu_custom_call.1} parent=51 // pred_region
          %455 = dma.done [#allocation17], 16
        $region84: #{tpu_custom_call.1} parent=51 // pred_fallthru
          _
        %s456 = sand.u32 %s58, 1
        %s457 = scalar_lea.sflag [#allocation5], %s456
        %s458 = sand.u32 %s58, 1
        %s459 = smul.addr %s458, 8
        %s460 = scalar_lea.vmem [#allocation4], %s459
        %p461 = pneg %p71
        %p462 = pneg %p68
        %s463 = sand.u32 %s36, 1
        %s464 = scalar_lea.sflag [#allocation8], %s463
        %s465 = sand.u32 %s84, 1
        %s466 = smul.addr %s465, 8
        %s467 = scalar_lea.vmem [#allocation7], %s466
        %p468 = pneg %p97
        %p469 = pneg %p94
        %p470 = pneg %p118
        %p471 = pneg %p115
        %p472 = pneg %p139
        %p473 = pneg %p136
        %p474 = pneg %p160
        %p475 = pneg %p157
        %p476 = pneg %p181
        %p477 = pneg %p178
        %p478 = pneg %p202
        %p479 = pneg %p199
        %p480 = pneg %p223
        %p481 = pneg %p220
        %p482 = pneg %p251
        %p483 = pneg %p248
        %s484 = sand.u32 %s238, 1
        %s485 = scalar_lea.sflag [#allocation6], %s484
        %s486 = sand.u32 %s238, 1
        %s487 = smul.addr %s486, 8
        %s488 = scalar_lea.vmem [#allocation18], %s487
        %p489 = pneg %p279
        %p490 = pneg %p276
        %s491 = sand.u32 %s266, 1
        %s492 = scalar_lea.sflag [#allocation20], %s491
        %s493 = sand.u32 %s266, 1
        %s494 = smul.addr %s493, 8
        %s495 = scalar_lea.vmem [#allocation19], %s494
        %p496 = scmp.eq.s32.totalorder %s41, 0
        // Predicated region
        $region85: #{tpu_custom_call.1} parent=51 // pred_check
          %p497 = pneg %p496
        $region86: #{tpu_custom_call.1} parent=51 // pred_check_branch
          %499 = sbr.rel (%p497) target = $region88
        $region87: #{tpu_custom_call.1} parent=51 // pred_region
          %v500 = vld [vmem:[%s427] sm:$0xff]
          %v501 = vld [vmem:[#allocation12] sm:$0xff]
          %v502 = vld [vmem:[#allocation12 + $0x8] sm:$0xff]
          %v503 = vld [vmem:[#allocation13] sm:$0x1]
          %v505 = vlaneseq
          %v506 = vshrl.u32 %v505, 7
          %v507 = vsub.s32 0, %v506
          %v508 = vrot.slane %v503, %v507
          %vm510 = vcmask 130048
          %v512 = vsel %vm510, %v500, 0
          %514 = vmatprep.subr.mxu0 0.0
          %515 = vmatpush1.msra.mxu0 %v501
          %516 = vmatprep.subr.mxu0 0.0
          %517 = vmatpush1.msra.mxu0 %v502
          %518 = vmatprep.subr.mxu0 0.0
          %519 = vmatpush1.msra.mxu0 0.0
          %520 = vmatprep.subr.mxu0 0.0
          %521 = vmatpush1.msra.mxu0 0.0
          %522 = vmatprep.subr.mxu0 0.0
          %523 = vmatpush1.msra.mxu0 0.0
          %524 = vmatprep.subr.mxu0 0.0
          %525 = vmatpush1.msra.mxu0 0.0
          %526 = vmatprep.subr.mxu0 0.0
          %527 = vmatpush1.msra.mxu0 0.0
          %528 = vmatprep.subr.mxu0 0.0
          %529 = vmatpush1.msra.mxu0 0.0
          %530 = vmatprep.subr.mxu0 0.0
          %531 = vmatpush1.msra.mxu0 0.0
          %532 = vmatprep.subr.mxu0 0.0
          %533 = vmatpush1.msra.mxu0 0.0
          %534 = vmatprep.subr.mxu0 0.0
          %535 = vmatpush1.msra.mxu0 0.0
          %536 = vmatprep.subr.mxu0 0.0
          %537 = vmatpush1.msra.mxu0 0.0
          %538 = vmatprep.subr.mxu0 0.0
          %539 = vmatpush1.msra.mxu0 0.0
          %540 = vmatprep.subr.mxu0 0.0
          %541 = vmatpush1.msra.mxu0 0.0
          %542 = vmatprep.subr.mxu0 0.0
          %543 = vmatpush1.msra.mxu0 0.0
          %544 = vmatprep.subr.mxu0 0.0
          %545 = vmatpush1.msra.mxu0 0.0
          %546 = vmatprep.subr.mxu0 0.0
          %547 = vmatpush1.msra.mxu0 0.0
          %548 = vmatprep.subr.mxu0 0.0
          %549 = vmatpush1.msra.mxu0 0.0
          %550 = vmatprep.subr.mxu0 0.0
          %551 = vmatpush1.msra.mxu0 0.0
          %552 = vmatprep.subr.mxu0 0.0
          %553 = vmatpush1.msra.mxu0 0.0
          %554 = vmatprep.subr.mxu0 0.0
          %555 = vmatpush1.msra.mxu0 0.0
          %556 = vmatprep.subr.mxu0 0.0
          %557 = vmatpush1.msra.mxu0 0.0
          %558 = vmatprep.subr.mxu0 0.0
          %559 = vmatpush1.msra.mxu0 0.0
          %560 = vmatprep.subr.mxu0 0.0
          %561 = vmatpush1.msra.mxu0 0.0
          %562 = vmatprep.subr.mxu0 0.0
          %563 = vmatpush1.msra.mxu0 0.0
          %564 = vmatprep.subr.mxu0 0.0
          %565 = vmatpush1.msra.mxu0 0.0
          %566 = vmatprep.subr.mxu0 0.0
          %567 = vmatpush1.msra.mxu0 0.0
          %568 = vmatprep.subr.mxu0 0.0
          %569 = vmatpush1.msra.mxu0 0.0
          %570 = vmatprep.subr.mxu0 0.0
          %571 = vmatpush1.msra.mxu0 0.0
          %572 = vmatprep.subr.mxu0 0.0
          %573 = vmatpush1.msra.mxu0 0.0
          %574 = vmatprep.subr.mxu0 0.0
          %575 = vmatpush1.msra.mxu0 0.0
          %576 = vmatprep.subr.mxu0 0.0
          %577 = vmatpush1.msra.mxu0 0.0
          %578 = vmatprep.mubr.f32.mxu0 0.0
          %579 = vmatmul.mubr.f32.gmra.mrb[0].mxu0 %v512
          %v580 = vpop.f32.mrb[0].mxu0
          %v581 = vadd.f32 %v508, %v580
          %v582 = vpop.f32.mrb[0].mxu0
          %583 = vdwg.mxu0
          %v584 = vld [vmem:[#allocation15] sm:$0xff]
          %v585 = vld [vmem:[#allocation15 + $0x8] sm:$0xff]
          %v586 = vld [vmem:[#allocation16] sm:$0x1]
          %v588 = vlaneseq
          %v589 = vshrl.u32 %v588, 7
          %v590 = vsub.s32 0, %v589
          %v591 = vrot.slane %v586, %v590
          %593 = vmatprep.subr.mxu0 0.0
          %594 = vmatpush1.msra.mxu0 %v584
          %595 = vmatprep.subr.mxu0 0.0
          %596 = vmatpush1.msra.mxu0 %v585
          %597 = vmatprep.subr.mxu0 0.0
          %598 = vmatpush1.msra.mxu0 0.0
          %599 = vmatprep.subr.mxu0 0.0
          %600 = vmatpush1.msra.mxu0 0.0
          %601 = vmatprep.subr.mxu0 0.0
          %602 = vmatpush1.msra.mxu0 0.0
          %603 = vmatprep.subr.mxu0 0.0
          %604 = vmatpush1.msra.mxu0 0.0
          %605 = vmatprep.subr.mxu0 0.0
          %606 = vmatpush1.msra.mxu0 0.0
          %607 = vmatprep.subr.mxu0 0.0
          %608 = vmatpush1.msra.mxu0 0.0
          %609 = vmatprep.subr.mxu0 0.0
          %610 = vmatpush1.msra.mxu0 0.0
          %611 = vmatprep.subr.mxu0 0.0
          %612 = vmatpush1.msra.mxu0 0.0
          %613 = vmatprep.subr.mxu0 0.0
          %614 = vmatpush1.msra.mxu0 0.0
          %615 = vmatprep.subr.mxu0 0.0
          %616 = vmatpush1.msra.mxu0 0.0
          %617 = vmatprep.subr.mxu0 0.0
          %618 = vmatpush1.msra.mxu0 0.0
          %619 = vmatprep.subr.mxu0 0.0
          %620 = vmatpush1.msra.mxu0 0.0
          %621 = vmatprep.subr.mxu0 0.0
          %622 = vmatpush1.msra.mxu0 0.0
          %623 = vmatprep.subr.mxu0 0.0
          %624 = vmatpush1.msra.mxu0 0.0
          %625 = vmatprep.subr.mxu0 0.0
          %626 = vmatpush1.msra.mxu0 0.0
          %627 = vmatprep.subr.mxu0 0.0
          %628 = vmatpush1.msra.mxu0 0.0
          %629 = vmatprep.subr.mxu0 0.0
          %630 = vmatpush1.msra.mxu0 0.0
          %631 = vmatprep.subr.mxu0 0.0
          %632 = vmatpush1.msra.mxu0 0.0
          %633 = vmatprep.subr.mxu0 0.0
          %634 = vmatpush1.msra.mxu0 0.0
          %635 = vmatprep.subr.mxu0 0.0
          %636 = vmatpush1.msra.mxu0 0.0
          %637 = vmatprep.subr.mxu0 0.0
          %638 = vmatpush1.msra.mxu0 0.0
          %639 = vmatprep.subr.mxu0 0.0
          %640 = vmatpush1.msra.mxu0 0.0
          %641 = vmatprep.subr.mxu0 0.0
          %642 = vmatpush1.msra.mxu0 0.0
          %643 = vmatprep.subr.mxu0 0.0
          %644 = vmatpush1.msra.mxu0 0.0
          %645 = vmatprep.subr.mxu0 0.0
          %646 = vmatpush1.msra.mxu0 0.0
          %647 = vmatprep.subr.mxu0 0.0
          %648 = vmatpush1.msra.mxu0 0.0
          %649 = vmatprep.subr.mxu0 0.0
          %650 = vmatpush1.msra.mxu0 0.0
          %651 = vmatprep.subr.mxu0 0.0
          %652 = vmatpush1.msra.mxu0 0.0
          %653 = vmatprep.subr.mxu0 0.0
          %654 = vmatpush1.msra.mxu0 0.0
          %655 = vmatprep.subr.mxu0 0.0
          %656 = vmatpush1.msra.mxu0 0.0
          %657 = vmatprep.mubr.f32.mxu0 0.0
          %658 = vmatmul.mubr.f32.gmra.mrb[0].mxu0 %v512
          %v659 = vpop.f32.mrb[0].mxu0
          %v660 = vadd.f32 %v591, %v659
          %v661 = vpop.f32.mrb[0].mxu0
          %662 = vdwg.mxu0
          %vm663 = vcmask 261120
          %664 = vst.msk [vmem:[#allocation2] sm:$0xff] %vm663, %v581
          %665 = vst.msk [vmem:[#allocation3] sm:$0xff] %vm663, %v660
        $region88: #{tpu_custom_call.1} parent=51 // pred_fallthru
          _
        %v666 = vld [vmem:[%s418] sm:$0xff]
        %v667 = vld [vmem:[#allocation9] sm:$0xff]
        %v668 = vld [vmem:[#allocation9 + $0x8] sm:$0xff]
        %v669 = vld [vmem:[#allocation9 + $0x10] sm:$0xff]
        %v670 = vld [vmem:[#allocation9 + $0x18] sm:$0xff]
        %v671 = vld [vmem:[#allocation10] sm:$0x1]
        %v673 = vlaneseq
        %v674 = vshrl.u32 %v673, 7
        %v675 = vsub.s32 0, %v674
        %v676 = vrot.slane %v671, %v675
        %vm678 = vcmask 261120
        %v680 = vsel %vm678, %v666, 0
        %682 = vmatprep.subr.mxu0 0.0
        %683 = vmatpush1.msra.mxu0 %v667
        %684 = vmatprep.subr.mxu0 0.0
        %685 = vmatpush1.msra.mxu0 %v668
        %686 = vmatprep.subr.mxu0 0.0
        %687 = vmatpush1.msra.mxu0 %v669
        %688 = vmatprep.subr.mxu0 0.0
        %689 = vmatpush1.msra.mxu0 %v670
        %690 = vmatprep.subr.mxu0 0.0
        %691 = vmatpush1.msra.mxu0 0.0
        %692 = vmatprep.subr.mxu0 0.0
        %693 = vmatpush1.msra.mxu0 0.0
        %694 = vmatprep.subr.mxu0 0.0
        %695 = vmatpush1.msra.mxu0 0.0
        %696 = vmatprep.subr.mxu0 0.0
        %697 = vmatpush1.msra.mxu0 0.0
        %698 = vmatprep.subr.mxu0 0.0
        %699 = vmatpush1.msra.mxu0 0.0
        %700 = vmatprep.subr.mxu0 0.0
        %701 = vmatpush1.msra.mxu0 0.0
        %702 = vmatprep.subr.mxu0 0.0
        %703 = vmatpush1.msra.mxu0 0.0
        %704 = vmatprep.subr.mxu0 0.0
        %705 = vmatpush1.msra.mxu0 0.0
        %706 = vmatprep.subr.mxu0 0.0
        %707 = vmatpush1.msra.mxu0 0.0
        %708 = vmatprep.subr.mxu0 0.0
        %709 = vmatpush1.msra.mxu0 0.0
        %710 = vmatprep.subr.mxu0 0.0
        %711 = vmatpush1.msra.mxu0 0.0
        %712 = vmatprep.subr.mxu0 0.0
        %713 = vmatpush1.msra.mxu0 0.0
        %714 = vmatprep.subr.mxu0 0.0
        %715 = vmatpush1.msra.mxu0 0.0
        %716 = vmatprep.subr.mxu0 0.0
        %717 = vmatpush1.msra.mxu0 0.0
        %718 = vmatprep.subr.mxu0 0.0
        %719 = vmatpush1.msra.mxu0 0.0
        %720 = vmatprep.subr.mxu0 0.0
        %721 = vmatpush1.msra.mxu0 0.0
        %722 = vmatprep.subr.mxu0 0.0
        %723 = vmatpush1.msra.mxu0 0.0
        %724 = vmatprep.subr.mxu0 0.0
        %725 = vmatpush1.msra.mxu0 0.0
        %726 = vmatprep.subr.mxu0 0.0
        %727 = vmatpush1.msra.mxu0 0.0
        %728 = vmatprep.subr.mxu0 0.0
        %729 = vmatpush1.msra.mxu0 0.0
        %730 = vmatprep.subr.mxu0 0.0
        %731 = vmatpush1.msra.mxu0 0.0
        %732 = vmatprep.subr.mxu0 0.0
        %733 = vmatpush1.msra.mxu0 0.0
        %734 = vmatprep.subr.mxu0 0.0
        %735 = vmatpush1.msra.mxu0 0.0
        %736 = vmatprep.subr.mxu0 0.0
        %737 = vmatpush1.msra.mxu0 0.0
        %738 = vmatprep.subr.mxu0 0.0
        %739 = vmatpush1.msra.mxu0 0.0
        %740 = vmatprep.subr.mxu0 0.0
        %741 = vmatpush1.msra.mxu0 0.0
        %742 = vmatprep.subr.mxu0 0.0
        %743 = vmatpush1.msra.mxu0 0.0
        %744 = vmatprep.subr.mxu0 0.0
        %745 = vmatpush1.msra.mxu0 0.0
        %746 = vmatprep.mubr.f32.mxu0 0.0
        %747 = vmatmul.mubr.f32.gmra.mrb[0].mxu0 %v680
        %v748 = vpop.f32.mrb[0].mxu0
        %v749 = vadd.f32 %v676, %v748
        %v750 = vpop.f32.mrb[0].mxu0
        %751 = vdwg.mxu0
        %v752 = vld [vmem:[#allocation2] sm:$0xff]
        %v753 = vld [vmem:[#allocation3] sm:$0xff]
        %v755 = vsel %vm678, %v749, 0
        %v758 = vsel %vm678, %v752, 0
        %760 = vmatprep.subr.mxu0 0.0
        %761 = vmatpush1.xpose.msra.mxu0 %v758
        %762 = vmatprep.subr.mxu0 0.0
        %763 = vmatpush1.xpose.msra.mxu0 0.0
        %764 = vmatprep.subr.mxu0 0.0
        %765 = vmatpush1.xpose.msra.mxu0 0.0
        %766 = vmatprep.subr.mxu0 0.0
        %767 = vmatpush1.xpose.msra.mxu0 0.0
        %768 = vmatprep.subr.mxu0 0.0
        %769 = vmatpush1.xpose.msra.mxu0 0.0
        %770 = vmatprep.subr.mxu0 0.0
        %771 = vmatpush1.xpose.msra.mxu0 0.0
        %772 = vmatprep.subr.mxu0 0.0
        %773 = vmatpush1.xpose.msra.mxu0 0.0
        %774 = vmatprep.subr.mxu0 0.0
        %775 = vmatpush1.xpose.msra.mxu0 0.0
        %776 = vmatprep.subr.mxu0 0.0
        %777 = vmatpush1.xpose.msra.mxu0 0.0
        %778 = vmatprep.subr.mxu0 0.0
        %779 = vmatpush1.xpose.msra.mxu0 0.0
        %780 = vmatprep.subr.mxu0 0.0
        %781 = vmatpush1.xpose.msra.mxu0 0.0
        %782 = vmatprep.subr.mxu0 0.0
        %783 = vmatpush1.xpose.msra.mxu0 0.0
        %784 = vmatprep.subr.mxu0 0.0
        %785 = vmatpush1.xpose.msra.mxu0 0.0
        %786 = vmatprep.subr.mxu0 0.0
        %787 = vmatpush1.xpose.msra.mxu0 0.0
        %788 = vmatprep.subr.mxu0 0.0
        %789 = vmatpush1.xpose.msra.mxu0 0.0
        %790 = vmatprep.subr.mxu0 0.0
        %791 = vmatpush1.xpose.msra.mxu0 0.0
        %792 = vmatprep.subr.mxu0 0.0
        %793 = vmatpush1.xpose.msra.mxu0 0.0
        %794 = vmatprep.subr.mxu0 0.0
        %795 = vmatpush1.xpose.msra.mxu0 0.0
        %796 = vmatprep.subr.mxu0 0.0
        %797 = vmatpush1.xpose.msra.mxu0 0.0
        %798 = vmatprep.subr.mxu0 0.0
        %799 = vmatpush1.xpose.msra.mxu0 0.0
        %800 = vmatprep.subr.mxu0 0.0
        %801 = vmatpush1.xpose.msra.mxu0 0.0
        %802 = vmatprep.subr.mxu0 0.0
        %803 = vmatpush1.xpose.msra.mxu0 0.0
        %804 = vmatprep.subr.mxu0 0.0
        %805 = vmatpush1.xpose.msra.mxu0 0.0
        %806 = vmatprep.subr.mxu0 0.0
        %807 = vmatpush1.xpose.msra.mxu0 0.0
        %808 = vmatprep.subr.mxu0 0.0
        %809 = vmatpush1.xpose.msra.mxu0 0.0
        %810 = vmatprep.subr.mxu0 0.0
        %811 = vmatpush1.xpose.msra.mxu0 0.0
        %812 = vmatprep.subr.mxu0 0.0
        %813 = vmatpush1.xpose.msra.mxu0 0.0
        %814 = vmatprep.subr.mxu0 0.0
        %815 = vmatpush1.xpose.msra.mxu0 0.0
        %816 = vmatprep.subr.mxu0 0.0
        %817 = vmatpush1.xpose.msra.mxu0 0.0
        %818 = vmatprep.subr.mxu0 0.0
        %819 = vmatpush1.xpose.msra.mxu0 0.0
        %820 = vmatprep.subr.mxu0 0.0
        %821 = vmatpush1.xpose.msra.mxu0 0.0
        %822 = vmatprep.subr.mxu0 0.0
        %823 = vmatpush1.xpose.msra.mxu0 0.0
        %824 = vmatprep.mubr.f32.mxu0 0.0
        %825 = vmatmul.mubr.f32.gmra.mrb[0].mxu0 %v755
        %v826 = vpop.f32.mrb[0].mxu0
        %v827 = vadd.f32 0.0, %v826
        %v828 = vpop.f32.mrb[0].mxu0
        %829 = vdwg.mxu0
        %vm830 = vcmask 64512
        %v831 = vsel %vm830, %v827, -inf
        %832 = vmax.xlane.f32.xlu0 %v831
        %v833 = vpop.xlane.xlu0 %832
        %v834 = vsub.f32 %v827, %v833
        %v835 = vmul.f32 %v834, 1.442695
        %v836 = vpow.pop %v835
        %v837 = vsel %vm830, %v836, 0.0
        %838 = vadd.xlane.f32.xlu0 %v837
        %v839 = vpop.xlane.xlu0 %838
        %v840 = vrcp.pop %v839
        %v841 = vmul.f32 %v836, %v840
        %v843 = vsel %vm830, %v841, 0
        %845 = vmatprep.subr.mxu0 0.0
        %846 = vmatpush1.msra.mxu0 %v753
        %847 = vmatprep.subr.mxu0 0.0
        %848 = vmatpush1.msra.mxu0 0.0
        %849 = vmatprep.subr.mxu0 0.0
        %850 = vmatpush1.msra.mxu0 0.0
        %851 = vmatprep.subr.mxu0 0.0
        %852 = vmatpush1.msra.mxu0 0.0
        %853 = vmatprep.subr.mxu0 0.0
        %854 = vmatpush1.msra.mxu0 0.0
        %855 = vmatprep.subr.mxu0 0.0
        %856 = vmatpush1.msra.mxu0 0.0
        %857 = vmatprep.subr.mxu0 0.0
        %858 = vmatpush1.msra.mxu0 0.0
        %859 = vmatprep.subr.mxu0 0.0
        %860 = vmatpush1.msra.mxu0 0.0
        %861 = vmatprep.subr.mxu0 0.0
        %862 = vmatpush1.msra.mxu0 0.0
        %863 = vmatprep.subr.mxu0 0.0
        %864 = vmatpush1.msra.mxu0 0.0
        %865 = vmatprep.subr.mxu0 0.0
        %866 = vmatpush1.msra.mxu0 0.0
        %867 = vmatprep.subr.mxu0 0.0
        %868 = vmatpush1.msra.mxu0 0.0
        %869 = vmatprep.subr.mxu0 0.0
        %870 = vmatpush1.msra.mxu0 0.0
        %871 = vmatprep.subr.mxu0 0.0
        %872 = vmatpush1.msra.mxu0 0.0
        %873 = vmatprep.subr.mxu0 0.0
        %874 = vmatpush1.msra.mxu0 0.0
        %875 = vmatprep.subr.mxu0 0.0
        %876 = vmatpush1.msra.mxu0 0.0
        %877 = vmatprep.subr.mxu0 0.0
        %878 = vmatpush1.msra.mxu0 0.0
        %879 = vmatprep.subr.mxu0 0.0
        %880 = vmatpush1.msra.mxu0 0.0
        %881 = vmatprep.subr.mxu0 0.0
        %882 = vmatpush1.msra.mxu0 0.0
        %883 = vmatprep.subr.mxu0 0.0
        %884 = vmatpush1.msra.mxu0 0.0
        %885 = vmatprep.subr.mxu0 0.0
        %886 = vmatpush1.msra.mxu0 0.0
        %887 = vmatprep.subr.mxu0 0.0
        %888 = vmatpush1.msra.mxu0 0.0
        %889 = vmatprep.subr.mxu0 0.0
        %890 = vmatpush1.msra.mxu0 0.0
        %891 = vmatprep.subr.mxu0 0.0
        %892 = vmatpush1.msra.mxu0 0.0
        %893 = vmatprep.subr.mxu0 0.0
        %894 = vmatpush1.msra.mxu0 0.0
        %895 = vmatprep.subr.mxu0 0.0
        %896 = vmatpush1.msra.mxu0 0.0
        %897 = vmatprep.subr.mxu0 0.0
        %898 = vmatpush1.msra.mxu0 0.0
        %899 = vmatprep.subr.mxu0 0.0
        %900 = vmatpush1.msra.mxu0 0.0
        %901 = vmatprep.subr.mxu0 0.0
        %902 = vmatpush1.msra.mxu0 0.0
        %903 = vmatprep.subr.mxu0 0.0
        %904 = vmatpush1.msra.mxu0 0.0
        %905 = vmatprep.subr.mxu0 0.0
        %906 = vmatpush1.msra.mxu0 0.0
        %907 = vmatprep.subr.mxu0 0.0
        %908 = vmatpush1.msra.mxu0 0.0
        %909 = vmatprep.mubr.f32.mxu0 0.0
        %910 = vmatmul.mubr.f32.gmra.mrb[0].mxu0 %v843
        %v911 = vpop.f32.mrb[0].mxu0
        %v912 = vadd.f32 0.0, %v911
        %v913 = vpop.f32.mrb[0].mxu0
        %914 = vdwg.mxu0
        %v915 = vadd.f32 %v666, %v912
        %916 = vst.msk [vmem:[%s488] sm:$0xff] %vm678, %v915
        %917 = vst.msk [vmem:[%s495] sm:$0xff] %vm830, %v841
        %s918 = sand.u32 %s238, 1
        %s919 = scalar_lea.sflag [#allocation6], %s918
        %s920 = sand.u32 %s238, 1
        %s921 = smul.addr %s920, 8
        %s922 = scalar_lea.vmem [#allocation18], %s921
        %s923 = sand.u32 %s266, 1
        %s924 = scalar_lea.sflag [#allocation20], %s923
        %s925 = sand.u32 %s266, 1
        %s926 = smul.addr %s925, 8
        %s927 = scalar_lea.vmem [#allocation19], %s926
        // Predicated region
        $region89: #{tpu_custom_call.1} parent=51 // pred_check
          %p928 = pneg %p248
        $region90: #{tpu_custom_call.1} parent=51 // pred_check_branch
          %930 = sbr.rel (%p928) target = $region92
        $region91: #{tpu_custom_call.1} parent=51 // pred_region
          %s932 = ssub.s32 128, 128
          %933 = vsyncadd %s919, %s932
          %s934 = sadd.s32 %s41, %s40
          %s935 = smul.addr %s934, 128
          %s936 = scalar_lea.hbm %s8, %s935
          %s938 = sshll.u32 %s922, 4
          %s939 = int_to_ptr.vmem [resolvable:$true] %s938
          %941 = dma.vmem_to_hbm [thread:$0]  %s939, 128, %s936, %s919
        $region92: #{tpu_custom_call.1} parent=51 // pred_fallthru
          _
        // Predicated region
        $region93: #{tpu_custom_call.1} parent=51 // pred_check
          %p942 = pneg %p276
        $region94: #{tpu_custom_call.1} parent=51 // pred_check_branch
          %944 = sbr.rel (%p942) target = $region96
        $region95: #{tpu_custom_call.1} parent=51 // pred_region
          %s946 = ssub.s32 128, 128
          %947 = vsyncadd %s924, %s946
          %s948 = sadd.s32 %s41, %s40
          %s949 = smul.addr %s948, 128
          %s950 = scalar_lea.hbm %s9, %s949
          %s952 = sshll.u32 %s927, 4
          %s953 = int_to_ptr.vmem [resolvable:$true] %s952
          %955 = dma.vmem_to_hbm [thread:$0]  %s953, 128, %s950, %s924
        $region96: #{tpu_custom_call.1} parent=51 // pred_fallthru
          _
      $region52: #{tpu_custom_call.1} parent=5 // pred_fallthru
        _
      %p956 = scmp.le.s32.totalorder 2, %s31
      // Predicated region
      $region97: #{tpu_custom_call.1} parent=5 // pred_check
        %p957 = pneg %p956
      $region98: #{tpu_custom_call.1} parent=5 // pred_check_branch
        %959 = sbr.rel (%p957) target = $region100
      $region99: #{tpu_custom_call.1} parent=5 // pred_region
        %s960 = ssub.s32 %s31, 2
        // Predicated region
        $region101: #{tpu_custom_call.1} parent=99 // pred_check
          %p961 = pneg %p254
        $region102: #{tpu_custom_call.1} parent=99 // pred_check_branch
          %963 = sbr.rel (%p961) target = $region104
        $region103: #{tpu_custom_call.1} parent=99 // pred_region
          %s964 = sand.u32 %s239, 1
          %s965 = scalar_lea.sflag [#allocation6], %s964
          %s966 = sand.u32 %s239, 1
          %s967 = smul.addr %s966, 8
          %s968 = scalar_lea.vmem [#allocation18], %s967
          %969 = dma.done %s965, 128
        $region104: #{tpu_custom_call.1} parent=99 // pred_fallthru
          _
        // Predicated region
        $region105: #{tpu_custom_call.1} parent=99 // pred_check
          %p970 = pneg %p282
        $region106: #{tpu_custom_call.1} parent=99 // pred_check_branch
          %972 = sbr.rel (%p970) target = $region108
        $region107: #{tpu_custom_call.1} parent=99 // pred_region
          %s973 = sand.u32 %s267, 1
          %s974 = scalar_lea.sflag [#allocation20], %s973
          %s975 = sand.u32 %s267, 1
          %s976 = smul.addr %s975, 8
          %s977 = scalar_lea.vmem [#allocation19], %s976
          %978 = dma.done %s974, 128
        $region108: #{tpu_custom_call.1} parent=99 // pred_fallthru
          _
      $region100: #{tpu_custom_call.1} parent=5 // pred_fallthru
        _
    $region6: #{tpu_custom_call.1} parent=1 // loop_footer
      %s35 = sadd.s32 1, %s31
    $region7: #{tpu_custom_call.1} parent=1 // loop_footer_branch
      %30 = sbr.rel target = $region3
    $region8: #{tpu_custom_call.1} parent=1 // loop_exit
      _
    %979 = vsyncpa [#allocation5], 1
    %s980 = scalar_lea.sflag [#allocation5], 1
    %981 = vsyncpa %s980, 1
    %982 = vsyncpa [#allocation8], 1
    %s983 = scalar_lea.sflag [#allocation8], 1
    %984 = vsyncpa %s983, 1
    %985 = vsyncpa [#allocation11], 1
    %986 = vsyncpa [#allocation14], 1
    %987 = vsyncpa [#allocation17], 1
    %988 = vsyncpa [#allocation6], 1
    %s989 = scalar_lea.sflag [#allocation6], 1
    %990 = vsyncpa %s989, 1
    %991 = vsyncpa [#allocation20], 1
    %s992 = scalar_lea.sflag [#allocation20], 1
    %993 = vsyncpa %s992, 1

</llo_original>
